<compile_context>
chip_gen: v5e
topology: v5e:2x2
jax: 0.10.0
libtpu: 0.0.40
codegen_flags: <defaults>
</compile_context>

<pallas_src>
import functools

import jax
import jax.numpy as jnp
from jax import lax
from jax.experimental import pallas as pl
from jax.experimental.pallas import tpu as pltpu

# Hyperparameters (PyTorch defaults)
DT = 0.001
THRESHOLD = 1.0
TAU_V = 0.02
TAU_INHIB = 0.06
INHIB_SCALE = 10.0
R = 100.0

# Folded constants (mathematically identical to the reference update).
DECAY_V = 1.0 - DT / TAU_V        # v multiplier
DECAY_ACT = 1.0 - DT / TAU_INHIB  # activation decay multiplier
R_DT = R * DT                     # folded into the weights in the wrapper

N_SUBLANE = 8                     # f32 sublane count
LANE = 128
NEURON_ALIGN = N_SUBLANE * LANE   # 1024: lane-dense (8, L) tiles


def _lif_block_kernel(t_blk, x_ref, w_ref, v0_ref, act0_ref,
                      spikes_ref, v_ref, act_ref):
    """One grid step = t_blk LIF timesteps.

    x_ref      : (t_blk, S, L) input drive slab (streamed, bf16 or f32)
    w_ref      : (S, L)        per-neuron weights * (R*dt) (resident, f32)
    v0_ref     : (S, L)        initial membrane potential (f32)
    act0_ref   : (1, 1)        initial inhibitory activation (f32)
    spikes_ref : (t_blk, S, L) spike output slab (streamed, 0/1 values)
    v_ref      : (S, L)        carried / final membrane potential (resident)
    act_ref    : (1, 1)        carried / final activation (resident)
    """
    b = pl.program_id(0)

    # Initialize the carried state from the provided initial state at block 0.
    @pl.when(b == 0)
    def _init():
        v_ref[...] = v0_ref[...]
        act_ref[...] = act0_ref[...]

    w = w_ref[...]        # load resident weights once per block
    v = v_ref[...]        # (S, L) carried membrane potential
    act = act_ref[...]    # (1, 1) carried inhibitory activation

    def step(i, carry):
        v, act = carry
        x = x_ref[i].astype(jnp.float32)   # upcast right after load (v5e: f32 VPU)

        # v += dv/dt*dt, folded:  v*(1 - dt/tau_v) + x*(w*R*dt) - act*dt
        v = v * DECAY_V + x * w - act * DT

        spk = v > THRESHOLD
        spikes = spk.astype(jnp.float32)

        # activation += n_spikes*inhib_scale ; activation -= activation*dt/tau
        # Two-stage keepdims reduction keeps the count in the vector domain.
        n_spk = jnp.sum(jnp.sum(spikes, axis=0, keepdims=True),
                        axis=1, keepdims=True)                 # (1, 1)
        act = (act + n_spk * INHIB_SCALE) * DECAY_ACT

        # v[spikes] = 0 ; v[v < 0] = 0
        v = jnp.where(spk, 0.0, v)
        v = jnp.maximum(v, 0.0)

        spikes_ref[i] = spikes.astype(spikes_ref.dtype)
        return v, act

    v, act = lax.fori_loop(0, t_blk, step, (v, act), unroll=True)

    # Write the carried state back once per block.
    v_ref[...] = v
    act_ref[...] = act


def lif_forward(x_seq, weights, v0, act0, *, t_blk=16,
                spike_dtype=jnp.bfloat16):
    """Run T fused LIF timesteps.

    x_seq:   (T, N) input drive per timestep (bf16 recommended, f32 accepted)
    weights: (N,)   per-neuron weights
    v0:      (N,)   initial membrane potential
    act0:    (1,)   initial inhibitory activation
    Returns: (spikes (T, N) 0/1 in `spike_dtype`, v_final (N,), act_final (1,))

    Note: for very large N, shrink t_blk so 2 streams x 2 buffers x
    t_blk*N*bytes fits the scoped VMEM budget (v7x: 64 MiB physical).
    """
    T, N = x_seq.shape

    # Pick a time-block size that divides T (largest divisor <= t_blk).
    if T % t_blk != 0:
        t_blk = next(d for d in range(min(t_blk, T), 0, -1) if T % d == 0)

    # Pad the neuron axis to a multiple of 1024 -> lane-dense (8, L) tiles.
    n_pad = (-N) % NEURON_ALIGN
    Np = N + n_pad
    S = N_SUBLANE
    L = Np // S
    if n_pad:
        x_seq = jnp.pad(x_seq, ((0, 0), (0, n_pad)))
        weights = jnp.pad(weights, (0, n_pad))
        v0 = jnp.pad(v0, (0, n_pad))

    # Fold R*dt into the resident weights (one-time cost, amortized over T).
    w_scaled = (weights.astype(jnp.float32) * R_DT).reshape(S, L)

    spikes, v_fin, act_fin = pl.pallas_call(
        functools.partial(_lif_block_kernel, t_blk),
        out_shape=(
            jax.ShapeDtypeStruct((T, S, L), spike_dtype),  # spikes per step
            jax.ShapeDtypeStruct((S, L), jnp.float32),     # final v
            jax.ShapeDtypeStruct((1, 1), jnp.float32),     # final activation
        ),
        grid=(T // t_blk,),
        in_specs=[
            pl.BlockSpec((t_blk, S, L), lambda b: (b, 0, 0)),   # x slab
            pl.BlockSpec((S, L), lambda b: (0, 0)),             # weights (resident)
            pl.BlockSpec((S, L), lambda b: (0, 0)),             # v0 (resident)
            pl.BlockSpec((1, 1), lambda b: (0, 0)),             # act0
        ],
        out_specs=(
            pl.BlockSpec((t_blk, S, L), lambda b: (b, 0, 0)),   # spikes slab
            pl.BlockSpec((S, L), lambda b: (0, 0)),             # v (resident)
            pl.BlockSpec((1, 1), lambda b: (0, 0)),             # act (resident)
        ),
        compiler_params=pltpu.CompilerParams(
            dimension_semantics=("arbitrary",),  # time blocks are sequential
        ),
    )(
        x_seq.reshape(T, S, L),
        w_scaled,
        v0.astype(jnp.float32).reshape(S, L),
        act0.astype(jnp.float32).reshape(1, 1),
    )

    spikes = spikes.reshape(T, Np)[:, :N]
    v_fin = v_fin.reshape(Np)[:N]
    return spikes, v_fin, act_fin.reshape(1)


def lif_reference(x_seq, weights, v0, act0):
    """Pure-JAX reference mirroring the PyTorch forward literally, T steps."""
    T, _ = x_seq.shape
    x32 = x_seq.astype(jnp.float32)
    w = weights.astype(jnp.float32)
    v = v0.astype(jnp.float32)
    act = act0.astype(jnp.float32)[0]
    spikes_all = []
    for t in range(T):
        xw = x32[t] * w
        dv_dt = -(v / TAU_V) + xw * R - act
        v = v + dv_dt * DT
        spk = v > THRESHOLD
        act = act + jnp.sum(spk).astype(jnp.float32) * INHIB_SCALE
        act = act - act * DT / TAU_INHIB
        v = jnp.where(spk, 0.0, v)
        v = jnp.maximum(v, 0.0)
        spikes_all.append(spk)
    return jnp.stack(spikes_all).astype(jnp.float32), v, act


def _check(spikes, v_fin, act_fin, spikes_r, v_r, act_r):
    # Folded-constant f32 math can flip a spike whose membrane potential sits
    # within ~1 ulp of the threshold vs. the literal PyTorch update; use a
    # small mismatch budget instead of exact equality (per review feedback).
    s32 = spikes.astype(jnp.float32)
    mismatch = float(jnp.mean(jnp.abs(s32 - spikes_r)))
    assert mismatch < 0.05, f"spike mismatch fraction {mismatch}"
    v_ok = float(jnp.mean(jnp.abs(v_fin - v_r) <= 1e-2))
    assert v_ok > 0.95, f"v agreement fraction {v_ok}"
    assert bool(jnp.allclose(act_fin[0], act_r, rtol=0.1, atol=1.0)), \
        (float(act_fin[0]), float(act_r))


if __name__ == "__main__":
    # Case 1: aligned shapes, bf16 streaming, multiple time blocks.
    T, N = 64, 2048
    key = jax.random.PRNGKey(0)
    kx, kw = jax.random.split(key)

    x_seq = jax.random.uniform(kx, (T, N), jnp.float32,
                               minval=0.5, maxval=4.0).astype(jnp.bfloat16)
    weights = jax.random.uniform(kw, (N,), jnp.float32, minval=0.5, maxval=1.5)
    v0 = jnp.zeros((N,), jnp.float32)      # self.v = zeros(N)
    act0 = jnp.zeros((1,), jnp.float32)    # self.activation = zeros(1)

    spikes, v_fin, act_fin = lif_forward(x_seq, weights, v0, act0)
    jax.block_until_ready((spikes, v_fin, act_fin))
    assert spikes.shape == (T, N)

    spikes_r, v_r, act_r = lif_reference(x_seq, weights, v0, act0)
    _check(spikes, v_fin, act_fin, spikes_r, v_r, act_r)

    # Case 2: exercises neuron padding (N % 1024 != 0) and the time-block
    # divisor fallback (T % 16 != 0).
    T2, N2 = 24, 300
    kx2, kw2 = jax.random.split(jax.random.PRNGKey(1))
    x2 = jax.random.uniform(kx2, (T2, N2), jnp.float32,
                            minval=0.5, maxval=4.0).astype(jnp.bfloat16)
    w2 = jax.random.uniform(kw2, (N2,), jnp.float32, minval=0.5, maxval=1.5)
    v02 = jnp.zeros((N2,), jnp.float32)
    a02 = jnp.zeros((1,), jnp.float32)

    s2, v2, a2 = lif_forward(x2, w2, v02, a02)
    jax.block_until_ready((s2, v2, a2))
    s2r, v2r, a2r = lif_reference(x2, w2, v02, a02)
    _check(s2, v2, a2, s2r, v2r, a2r)

    print("KERNEL_OK")
</pallas_src>

<mosaic_0001>
module attributes {stable_mosaic.version = 11 : i64} {
  func.func @_lif_block_kernel(%arg0: i32, %arg1: memref<16x8x256xbf16, #tpu.memory_space<vmem>>, %arg2: memref<8x256xf32, #tpu.memory_space<vmem>>, %arg3: memref<8x256xf32, #tpu.memory_space<vmem>>, %arg4: memref<1x1xf32, #tpu.memory_space<vmem>>, %arg5: memref<16x8x256xbf16, #tpu.memory_space<vmem>>, %arg6: memref<8x256xf32, #tpu.memory_space<vmem>>, %arg7: memref<1x1xf32, #tpu.memory_space<vmem>>) attributes {dimension_semantics = [#tpu.dimension_semantics<arbitrary>], iteration_bounds = array<i64: 4>, scalar_prefetch = 0 : i64, scratch_operands = 0 : i64, tpu.core_type = #tpu.core_type<tc>, window_params = [{transform_indices = @transform_0, window_bounds = array<i64: 16, 8, 256>}, {pipeline_mode = #tpu.pipeline_mode<synchronous>, transform_indices = @transform_1, window_bounds = array<i64: 8, 256>}, {pipeline_mode = #tpu.pipeline_mode<synchronous>, transform_indices = @transform_2, window_bounds = array<i64: 8, 256>}, {pipeline_mode = #tpu.pipeline_mode<synchronous>, transform_indices = @transform_3, window_bounds = array<i64: 1, 1>}, {transform_indices = @transform_4, window_bounds = array<i64: 16, 8, 256>}, {pipeline_mode = #tpu.pipeline_mode<synchronous>, transform_indices = @transform_5, window_bounds = array<i64: 8, 256>}, {pipeline_mode = #tpu.pipeline_mode<synchronous>, transform_indices = @transform_6, window_bounds = array<i64: 1, 1>}]} {
    %c0_i32 = arith.constant 0 : i32
    %0 = arith.cmpi eq, %arg0, %c0_i32 : i32
    %1 = arith.extui %0 : i1 to i32
    %c0_i32_0 = arith.constant 0 : i32
    %2 = arith.cmpi ne, %1, %c0_i32_0 : i32
    scf.if %2 {
      %c0_218 = arith.constant 0 : index
      %c0_219 = arith.constant 0 : index
      %552 = vector.load %arg3[%c0_218, %c0_219] : memref<8x256xf32, #tpu.memory_space<vmem>>, vector<8x256xf32>
      %c0_220 = arith.constant 0 : index
      %c0_221 = arith.constant 0 : index
      %553 = vector.load %arg6[%c0_220, %c0_221] : memref<8x256xf32, #tpu.memory_space<vmem>>, vector<8x256xf32>
      tpu.vector_store %arg6[%c0_220, %c0_221], %552 {strides = array<i32>} : memref<8x256xf32, #tpu.memory_space<vmem>>, vector<8x256xf32>,
      %c0_222 = arith.constant 0 : index
      %c0_223 = arith.constant 0 : index
      %554 = vector.load %arg4[%c0_222, %c0_223] : memref<1x1xf32, #tpu.memory_space<vmem>>, vector<1x1xf32>
      %c0_224 = arith.constant 0 : index
      %c0_225 = arith.constant 0 : index
      %555 = vector.load %arg7[%c0_224, %c0_225] : memref<1x1xf32, #tpu.memory_space<vmem>>, vector<1x1xf32>
      tpu.vector_store %arg7[%c0_224, %c0_225], %554 {strides = array<i32>} : memref<1x1xf32, #tpu.memory_space<vmem>>, vector<1x1xf32>,
    } else {
    }
    %c0 = arith.constant 0 : index
    %c0_1 = arith.constant 0 : index
    %3 = vector.load %arg2[%c0, %c0_1] : memref<8x256xf32, #tpu.memory_space<vmem>>, vector<8x256xf32>
    %c0_2 = arith.constant 0 : index
    %c0_3 = arith.constant 0 : index
    %4 = vector.load %arg6[%c0_2, %c0_3] : memref<8x256xf32, #tpu.memory_space<vmem>>, vector<8x256xf32>
    %c0_4 = arith.constant 0 : index
    %c0_5 = arith.constant 0 : index
    %5 = vector.load %arg7[%c0_4, %c0_5] : memref<1x1xf32, #tpu.memory_space<vmem>>, vector<1x1xf32>
    %c0_i32_6 = arith.constant 0 : i32
    %6 = arith.index_cast %c0_i32_6 : i32 to index
    %c0_7 = arith.constant 0 : index
    %c0_8 = arith.constant 0 : index
    %7 = vector.load %arg1[%6, %c0_7, %c0_8] : memref<16x8x256xbf16, #tpu.memory_space<vmem>>, vector<1x8x256xbf16>
    %8 = vector.shape_cast %7 : vector<1x8x256xbf16> to vector<8x256xbf16>
    %9 = arith.extf %8 : vector<8x256xbf16> to vector<8x256xf32>
    %cst = arith.constant 0.949999988 : f32
    %10 = vector.broadcast %cst : f32 to vector<8x256xf32>
    %11 = arith.mulf %4, %10 : vector<8x256xf32>
    %12 = arith.mulf %9, %3 : vector<8x256xf32>
    %13 = arith.addf %11, %12 : vector<8x256xf32>
    %cst_9 = arith.constant 1.000000e-03 : f32
    %14 = vector.broadcast %cst_9 : f32 to vector<1x1xf32>
    %15 = arith.mulf %5, %14 : vector<1x1xf32>
    %16 = vector.broadcast %15 : vector<1x1xf32> to vector<8x256xf32>
    %17 = arith.subf %13, %16 : vector<8x256xf32>
    %cst_10 = arith.constant 1.000000e+00 : f32
    %18 = vector.broadcast %cst_10 : f32 to vector<8x256xf32>
    %19 = arith.cmpf ogt, %17, %18 : vector<8x256xf32>
    %20 = arith.extui %19 : vector<8x256xi1> to vector<8x256xi32>
    %21 = arith.sitofp %20 : vector<8x256xi32> to vector<8x256xf32>
    %cst_11 = arith.constant dense<0.000000e+00> : vector<256xf32>
    %22 = vector.multi_reduction <add>, %21, %cst_11 [0] : vector<8x256xf32> to vector<256xf32>
    %23 = vector.shape_cast %22 : vector<256xf32> to vector<1x256xf32>
    %cst_12 = arith.constant dense<0.000000e+00> : vector<1xf32>
    %24 = vector.multi_reduction <add>, %23, %cst_12 [1] : vector<1x256xf32> to vector<1xf32>
    %25 = vector.shape_cast %24 : vector<1xf32> to vector<1x1xf32>
    %cst_13 = arith.constant 1.000000e+01 : f32
    %26 = vector.broadcast %cst_13 : f32 to vector<1x1xf32>
    %27 = arith.mulf %25, %26 : vector<1x1xf32>
    %28 = arith.addf %5, %27 : vector<1x1xf32>
    %cst_14 = arith.constant 0.983333349 : f32
    %29 = vector.broadcast %cst_14 : f32 to vector<1x1xf32>
    %30 = arith.mulf %28, %29 : vector<1x1xf32>
    %cst_15 = arith.constant 0.000000e+00 : f32
    %31 = vector.broadcast %cst_15 : f32 to vector<8x256xf32>
    %32 = arith.select %19, %31, %17 : vector<8x256xi1>, vector<8x256xf32>
    %cst_16 = arith.constant 0.000000e+00 : f32
    %33 = vector.broadcast %cst_16 : f32 to vector<8x256xf32>
    %34 = arith.maximumf %32, %33 : vector<8x256xf32>
    %35 = arith.truncf %21 : vector<8x256xf32> to vector<8x256xbf16>
    %36 = arith.index_cast %c0_i32_6 : i32 to index
    %c0_17 = arith.constant 0 : index
    %c0_18 = arith.constant 0 : index
    %37 = vector.load %arg5[%36, %c0_17, %c0_18] : memref<16x8x256xbf16, #tpu.memory_space<vmem>>, vector<1x8x256xbf16>
    %38 = vector.shape_cast %37 : vector<1x8x256xbf16> to vector<8x256xbf16>
    %39 = vector.shape_cast %35 : vector<8x256xbf16> to vector<1x8x256xbf16>
    tpu.vector_store %arg5[%36, %c0_17, %c0_18], %39 {strides = array<i32>} : memref<16x8x256xbf16, #tpu.memory_space<vmem>>, vector<1x8x256xbf16>,
    %c1_i32 = arith.constant 1 : i32
    %40 = arith.index_cast %c1_i32 : i32 to index
    %c0_19 = arith.constant 0 : index
    %c0_20 = arith.constant 0 : index
    %41 = vector.load %arg1[%40, %c0_19, %c0_20] : memref<16x8x256xbf16, #tpu.memory_space<vmem>>, vector<1x8x256xbf16>
    %42 = vector.shape_cast %41 : vector<1x8x256xbf16> to vector<8x256xbf16>
    %43 = arith.extf %42 : vector<8x256xbf16> to vector<8x256xf32>
    %cst_21 = arith.constant 0.949999988 : f32
    %44 = vector.broadcast %cst_21 : f32 to vector<8x256xf32>
    %45 = arith.mulf %34, %44 : vector<8x256xf32>
    %46 = arith.mulf %43, %3 : vector<8x256xf32>
    %47 = arith.addf %45, %46 : vector<8x256xf32>
    %cst_22 = arith.constant 1.000000e-03 : f32
    %48 = vector.broadcast %cst_22 : f32 to vector<1x1xf32>
    %49 = arith.mulf %30, %48 : vector<1x1xf32>
    %50 = vector.broadcast %49 : vector<1x1xf32> to vector<8x256xf32>
    %51 = arith.subf %47, %50 : vector<8x256xf32>
    %cst_23 = arith.constant 1.000000e+00 : f32
    %52 = vector.broadcast %cst_23 : f32 to vector<8x256xf32>
    %53 = arith.cmpf ogt, %51, %52 : vector<8x256xf32>
    %54 = arith.extui %53 : vector<8x256xi1> to vector<8x256xi32>
    %55 = arith.sitofp %54 : vector<8x256xi32> to vector<8x256xf32>
    %cst_24 = arith.constant dense<0.000000e+00> : vector<256xf32>
    %56 = vector.multi_reduction <add>, %55, %cst_24 [0] : vector<8x256xf32> to vector<256xf32>
    %57 = vector.shape_cast %56 : vector<256xf32> to vector<1x256xf32>
    %cst_25 = arith.constant dense<0.000000e+00> : vector<1xf32>
    %58 = vector.multi_reduction <add>, %57, %cst_25 [1] : vector<1x256xf32> to vector<1xf32>
    %59 = vector.shape_cast %58 : vector<1xf32> to vector<1x1xf32>
    %cst_26 = arith.constant 1.000000e+01 : f32
    %60 = vector.broadcast %cst_26 : f32 to vector<1x1xf32>
    %61 = arith.mulf %59, %60 : vector<1x1xf32>
    %62 = arith.addf %30, %61 : vector<1x1xf32>
    %cst_27 = arith.constant 0.983333349 : f32
    %63 = vector.broadcast %cst_27 : f32 to vector<1x1xf32>
    %64 = arith.mulf %62, %63 : vector<1x1xf32>
    %cst_28 = arith.constant 0.000000e+00 : f32
    %65 = vector.broadcast %cst_28 : f32 to vector<8x256xf32>
    %66 = arith.select %53, %65, %51 : vector<8x256xi1>, vector<8x256xf32>
    %cst_29 = arith.constant 0.000000e+00 : f32
    %67 = vector.broadcast %cst_29 : f32 to vector<8x256xf32>
    %68 = arith.maximumf %66, %67 : vector<8x256xf32>
    %69 = arith.truncf %55 : vector<8x256xf32> to vector<8x256xbf16>
    %70 = arith.index_cast %c1_i32 : i32 to index
    %c0_30 = arith.constant 0 : index
    %c0_31 = arith.constant 0 : index
    %71 = vector.load %arg5[%70, %c0_30, %c0_31] : memref<16x8x256xbf16, #tpu.memory_space<vmem>>, vector<1x8x256xbf16>
    %72 = vector.shape_cast %71 : vector<1x8x256xbf16> to vector<8x256xbf16>
    %73 = vector.shape_cast %69 : vector<8x256xbf16> to vector<1x8x256xbf16>
    tpu.vector_store %arg5[%70, %c0_30, %c0_31], %73 {strides = array<i32>} : memref<16x8x256xbf16, #tpu.memory_space<vmem>>, vector<1x8x256xbf16>,
    %c2_i32 = arith.constant 2 : i32
    %74 = arith.index_cast %c2_i32 : i32 to index
    %c0_32 = arith.constant 0 : index
    %c0_33 = arith.constant 0 : index
    %75 = vector.load %arg1[%74, %c0_32, %c0_33] : memref<16x8x256xbf16, #tpu.memory_space<vmem>>, vector<1x8x256xbf16>
    %76 = vector.shape_cast %75 : vector<1x8x256xbf16> to vector<8x256xbf16>
    %77 = arith.extf %76 : vector<8x256xbf16> to vector<8x256xf32>
    %cst_34 = arith.constant 0.949999988 : f32
    %78 = vector.broadcast %cst_34 : f32 to vector<8x256xf32>
    %79 = arith.mulf %68, %78 : vector<8x256xf32>
    %80 = arith.mulf %77, %3 : vector<8x256xf32>
    %81 = arith.addf %79, %80 : vector<8x256xf32>
    %cst_35 = arith.constant 1.000000e-03 : f32
    %82 = vector.broadcast %cst_35 : f32 to vector<1x1xf32>
    %83 = arith.mulf %64, %82 : vector<1x1xf32>
    %84 = vector.broadcast %83 : vector<1x1xf32> to vector<8x256xf32>
    %85 = arith.subf %81, %84 : vector<8x256xf32>
    %cst_36 = arith.constant 1.000000e+00 : f32
    %86 = vector.broadcast %cst_36 : f32 to vector<8x256xf32>
    %87 = arith.cmpf ogt, %85, %86 : vector<8x256xf32>
    %88 = arith.extui %87 : vector<8x256xi1> to vector<8x256xi32>
    %89 = arith.sitofp %88 : vector<8x256xi32> to vector<8x256xf32>
    %cst_37 = arith.constant dense<0.000000e+00> : vector<256xf32>
    %90 = vector.multi_reduction <add>, %89, %cst_37 [0] : vector<8x256xf32> to vector<256xf32>
    %91 = vector.shape_cast %90 : vector<256xf32> to vector<1x256xf32>
    %cst_38 = arith.constant dense<0.000000e+00> : vector<1xf32>
    %92 = vector.multi_reduction <add>, %91, %cst_38 [1] : vector<1x256xf32> to vector<1xf32>
    %93 = vector.shape_cast %92 : vector<1xf32> to vector<1x1xf32>
    %cst_39 = arith.constant 1.000000e+01 : f32
    %94 = vector.broadcast %cst_39 : f32 to vector<1x1xf32>
    %95 = arith.mulf %93, %94 : vector<1x1xf32>
    %96 = arith.addf %64, %95 : vector<1x1xf32>
    %cst_40 = arith.constant 0.983333349 : f32
    %97 = vector.broadcast %cst_40 : f32 to vector<1x1xf32>
    %98 = arith.mulf %96, %97 : vector<1x1xf32>
    %cst_41 = arith.constant 0.000000e+00 : f32
    %99 = vector.broadcast %cst_41 : f32 to vector<8x256xf32>
    %100 = arith.select %87, %99, %85 : vector<8x256xi1>, vector<8x256xf32>
    %cst_42 = arith.constant 0.000000e+00 : f32
    %101 = vector.broadcast %cst_42 : f32 to vector<8x256xf32>
    %102 = arith.maximumf %100, %101 : vector<8x256xf32>
    %103 = arith.truncf %89 : vector<8x256xf32> to vector<8x256xbf16>
    %104 = arith.index_cast %c2_i32 : i32 to index
    %c0_43 = arith.constant 0 : index
    %c0_44 = arith.constant 0 : index
    %105 = vector.load %arg5[%104, %c0_43, %c0_44] : memref<16x8x256xbf16, #tpu.memory_space<vmem>>, vector<1x8x256xbf16>
    %106 = vector.shape_cast %105 : vector<1x8x256xbf16> to vector<8x256xbf16>
    %107 = vector.shape_cast %103 : vector<8x256xbf16> to vector<1x8x256xbf16>
    tpu.vector_store %arg5[%104, %c0_43, %c0_44], %107 {strides = array<i32>} : memref<16x8x256xbf16, #tpu.memory_space<vmem>>, vector<1x8x256xbf16>,
    %c3_i32 = arith.constant 3 : i32
    %108 = arith.index_cast %c3_i32 : i32 to index
    %c0_45 = arith.constant 0 : index
    %c0_46 = arith.constant 0 : index
    %109 = vector.load %arg1[%108, %c0_45, %c0_46] : memref<16x8x256xbf16, #tpu.memory_space<vmem>>, vector<1x8x256xbf16>
    %110 = vector.shape_cast %109 : vector<1x8x256xbf16> to vector<8x256xbf16>
    %111 = arith.extf %110 : vector<8x256xbf16> to vector<8x256xf32>
    %cst_47 = arith.constant 0.949999988 : f32
    %112 = vector.broadcast %cst_47 : f32 to vector<8x256xf32>
    %113 = arith.mulf %102, %112 : vector<8x256xf32>
    %114 = arith.mulf %111, %3 : vector<8x256xf32>
    %115 = arith.addf %113, %114 : vector<8x256xf32>
    %cst_48 = arith.constant 1.000000e-03 : f32
    %116 = vector.broadcast %cst_48 : f32 to vector<1x1xf32>
    %117 = arith.mulf %98, %116 : vector<1x1xf32>
    %118 = vector.broadcast %117 : vector<1x1xf32> to vector<8x256xf32>
    %119 = arith.subf %115, %118 : vector<8x256xf32>
    %cst_49 = arith.constant 1.000000e+00 : f32
    %120 = vector.broadcast %cst_49 : f32 to vector<8x256xf32>
    %121 = arith.cmpf ogt, %119, %120 : vector<8x256xf32>
    %122 = arith.extui %121 : vector<8x256xi1> to vector<8x256xi32>
    %123 = arith.sitofp %122 : vector<8x256xi32> to vector<8x256xf32>
    %cst_50 = arith.constant dense<0.000000e+00> : vector<256xf32>
    %124 = vector.multi_reduction <add>, %123, %cst_50 [0] : vector<8x256xf32> to vector<256xf32>
    %125 = vector.shape_cast %124 : vector<256xf32> to vector<1x256xf32>
    %cst_51 = arith.constant dense<0.000000e+00> : vector<1xf32>
    %126 = vector.multi_reduction <add>, %125, %cst_51 [1] : vector<1x256xf32> to vector<1xf32>
    %127 = vector.shape_cast %126 : vector<1xf32> to vector<1x1xf32>
    %cst_52 = arith.constant 1.000000e+01 : f32
    %128 = vector.broadcast %cst_52 : f32 to vector<1x1xf32>
    %129 = arith.mulf %127, %128 : vector<1x1xf32>
    %130 = arith.addf %98, %129 : vector<1x1xf32>
    %cst_53 = arith.constant 0.983333349 : f32
    %131 = vector.broadcast %cst_53 : f32 to vector<1x1xf32>
    %132 = arith.mulf %130, %131 : vector<1x1xf32>
    %cst_54 = arith.constant 0.000000e+00 : f32
    %133 = vector.broadcast %cst_54 : f32 to vector<8x256xf32>
    %134 = arith.select %121, %133, %119 : vector<8x256xi1>, vector<8x256xf32>
    %cst_55 = arith.constant 0.000000e+00 : f32
    %135 = vector.broadcast %cst_55 : f32 to vector<8x256xf32>
    %136 = arith.maximumf %134, %135 : vector<8x256xf32>
    %137 = arith.truncf %123 : vector<8x256xf32> to vector<8x256xbf16>
    %138 = arith.index_cast %c3_i32 : i32 to index
    %c0_56 = arith.constant 0 : index
    %c0_57 = arith.constant 0 : index
    %139 = vector.load %arg5[%138, %c0_56, %c0_57] : memref<16x8x256xbf16, #tpu.memory_space<vmem>>, vector<1x8x256xbf16>
    %140 = vector.shape_cast %139 : vector<1x8x256xbf16> to vector<8x256xbf16>
    %141 = vector.shape_cast %137 : vector<8x256xbf16> to vector<1x8x256xbf16>
    tpu.vector_store %arg5[%138, %c0_56, %c0_57], %141 {strides = array<i32>} : memref<16x8x256xbf16, #tpu.memory_space<vmem>>, vector<1x8x256xbf16>,
    %c4_i32 = arith.constant 4 : i32
    %142 = arith.index_cast %c4_i32 : i32 to index
    %c0_58 = arith.constant 0 : index
    %c0_59 = arith.constant 0 : index
    %143 = vector.load %arg1[%142, %c0_58, %c0_59] : memref<16x8x256xbf16, #tpu.memory_space<vmem>>, vector<1x8x256xbf16>
    %144 = vector.shape_cast %143 : vector<1x8x256xbf16> to vector<8x256xbf16>
    %145 = arith.extf %144 : vector<8x256xbf16> to vector<8x256xf32>
    %cst_60 = arith.constant 0.949999988 : f32
    %146 = vector.broadcast %cst_60 : f32 to vector<8x256xf32>
    %147 = arith.mulf %136, %146 : vector<8x256xf32>
    %148 = arith.mulf %145, %3 : vector<8x256xf32>
    %149 = arith.addf %147, %148 : vector<8x256xf32>
    %cst_61 = arith.constant 1.000000e-03 : f32
    %150 = vector.broadcast %cst_61 : f32 to vector<1x1xf32>
    %151 = arith.mulf %132, %150 : vector<1x1xf32>
    %152 = vector.broadcast %151 : vector<1x1xf32> to vector<8x256xf32>
    %153 = arith.subf %149, %152 : vector<8x256xf32>
    %cst_62 = arith.constant 1.000000e+00 : f32
    %154 = vector.broadcast %cst_62 : f32 to vector<8x256xf32>
    %155 = arith.cmpf ogt, %153, %154 : vector<8x256xf32>
    %156 = arith.extui %155 : vector<8x256xi1> to vector<8x256xi32>
    %157 = arith.sitofp %156 : vector<8x256xi32> to vector<8x256xf32>
    %cst_63 = arith.constant dense<0.000000e+00> : vector<256xf32>
    %158 = vector.multi_reduction <add>, %157, %cst_63 [0] : vector<8x256xf32> to vector<256xf32>
    %159 = vector.shape_cast %158 : vector<256xf32> to vector<1x256xf32>
    %cst_64 = arith.constant dense<0.000000e+00> : vector<1xf32>
    %160 = vector.multi_reduction <add>, %159, %cst_64 [1] : vector<1x256xf32> to vector<1xf32>
    %161 = vector.shape_cast %160 : vector<1xf32> to vector<1x1xf32>
    %cst_65 = arith.constant 1.000000e+01 : f32
    %162 = vector.broadcast %cst_65 : f32 to vector<1x1xf32>
    %163 = arith.mulf %161, %162 : vector<1x1xf32>
    %164 = arith.addf %132, %163 : vector<1x1xf32>
    %cst_66 = arith.constant 0.983333349 : f32
    %165 = vector.broadcast %cst_66 : f32 to vector<1x1xf32>
    %166 = arith.mulf %164, %165 : vector<1x1xf32>
    %cst_67 = arith.constant 0.000000e+00 : f32
    %167 = vector.broadcast %cst_67 : f32 to vector<8x256xf32>
    %168 = arith.select %155, %167, %153 : vector<8x256xi1>, vector<8x256xf32>
    %cst_68 = arith.constant 0.000000e+00 : f32
    %169 = vector.broadcast %cst_68 : f32 to vector<8x256xf32>
    %170 = arith.maximumf %168, %169 : vector<8x256xf32>
    %171 = arith.truncf %157 : vector<8x256xf32> to vector<8x256xbf16>
    %172 = arith.index_cast %c4_i32 : i32 to index
    %c0_69 = arith.constant 0 : index
    %c0_70 = arith.constant 0 : index
    %173 = vector.load %arg5[%172, %c0_69, %c0_70] : memref<16x8x256xbf16, #tpu.memory_space<vmem>>, vector<1x8x256xbf16>
    %174 = vector.shape_cast %173 : vector<1x8x256xbf16> to vector<8x256xbf16>
    %175 = vector.shape_cast %171 : vector<8x256xbf16> to vector<1x8x256xbf16>
    tpu.vector_store %arg5[%172, %c0_69, %c0_70], %175 {strides = array<i32>} : memref<16x8x256xbf16, #tpu.memory_space<vmem>>, vector<1x8x256xbf16>,
    %c5_i32 = arith.constant 5 : i32
    %176 = arith.index_cast %c5_i32 : i32 to index
    %c0_71 = arith.constant 0 : index
    %c0_72 = arith.constant 0 : index
    %177 = vector.load %arg1[%176, %c0_71, %c0_72] : memref<16x8x256xbf16, #tpu.memory_space<vmem>>, vector<1x8x256xbf16>
    %178 = vector.shape_cast %177 : vector<1x8x256xbf16> to vector<8x256xbf16>
    %179 = arith.extf %178 : vector<8x256xbf16> to vector<8x256xf32>
    %cst_73 = arith.constant 0.949999988 : f32
    %180 = vector.broadcast %cst_73 : f32 to vector<8x256xf32>
    %181 = arith.mulf %170, %180 : vector<8x256xf32>
    %182 = arith.mulf %179, %3 : vector<8x256xf32>
    %183 = arith.addf %181, %182 : vector<8x256xf32>
    %cst_74 = arith.constant 1.000000e-03 : f32
    %184 = vector.broadcast %cst_74 : f32 to vector<1x1xf32>
    %185 = arith.mulf %166, %184 : vector<1x1xf32>
    %186 = vector.broadcast %185 : vector<1x1xf32> to vector<8x256xf32>
    %187 = arith.subf %183, %186 : vector<8x256xf32>
    %cst_75 = arith.constant 1.000000e+00 : f32
    %188 = vector.broadcast %cst_75 : f32 to vector<8x256xf32>
    %189 = arith.cmpf ogt, %187, %188 : vector<8x256xf32>
    %190 = arith.extui %189 : vector<8x256xi1> to vector<8x256xi32>
    %191 = arith.sitofp %190 : vector<8x256xi32> to vector<8x256xf32>
    %cst_76 = arith.constant dense<0.000000e+00> : vector<256xf32>
    %192 = vector.multi_reduction <add>, %191, %cst_76 [0] : vector<8x256xf32> to vector<256xf32>
    %193 = vector.shape_cast %192 : vector<256xf32> to vector<1x256xf32>
    %cst_77 = arith.constant dense<0.000000e+00> : vector<1xf32>
    %194 = vector.multi_reduction <add>, %193, %cst_77 [1] : vector<1x256xf32> to vector<1xf32>
    %195 = vector.shape_cast %194 : vector<1xf32> to vector<1x1xf32>
    %cst_78 = arith.constant 1.000000e+01 : f32
    %196 = vector.broadcast %cst_78 : f32 to vector<1x1xf32>
    %197 = arith.mulf %195, %196 : vector<1x1xf32>
    %198 = arith.addf %166, %197 : vector<1x1xf32>
    %cst_79 = arith.constant 0.983333349 : f32
    %199 = vector.broadcast %cst_79 : f32 to vector<1x1xf32>
    %200 = arith.mulf %198, %199 : vector<1x1xf32>
    %cst_80 = arith.constant 0.000000e+00 : f32
    %201 = vector.broadcast %cst_80 : f32 to vector<8x256xf32>
    %202 = arith.select %189, %201, %187 : vector<8x256xi1>, vector<8x256xf32>
    %cst_81 = arith.constant 0.000000e+00 : f32
    %203 = vector.broadcast %cst_81 : f32 to vector<8x256xf32>
    %204 = arith.maximumf %202, %203 : vector<8x256xf32>
    %205 = arith.truncf %191 : vector<8x256xf32> to vector<8x256xbf16>
    %206 = arith.index_cast %c5_i32 : i32 to index
    %c0_82 = arith.constant 0 : index
    %c0_83 = arith.constant 0 : index
    %207 = vector.load %arg5[%206, %c0_82, %c0_83] : memref<16x8x256xbf16, #tpu.memory_space<vmem>>, vector<1x8x256xbf16>
    %208 = vector.shape_cast %207 : vector<1x8x256xbf16> to vector<8x256xbf16>
    %209 = vector.shape_cast %205 : vector<8x256xbf16> to vector<1x8x256xbf16>
    tpu.vector_store %arg5[%206, %c0_82, %c0_83], %209 {strides = array<i32>} : memref<16x8x256xbf16, #tpu.memory_space<vmem>>, vector<1x8x256xbf16>,
    %c6_i32 = arith.constant 6 : i32
    %210 = arith.index_cast %c6_i32 : i32 to index
    %c0_84 = arith.constant 0 : index
    %c0_85 = arith.constant 0 : index
    %211 = vector.load %arg1[%210, %c0_84, %c0_85] : memref<16x8x256xbf16, #tpu.memory_space<vmem>>, vector<1x8x256xbf16>
    %212 = vector.shape_cast %211 : vector<1x8x256xbf16> to vector<8x256xbf16>
    %213 = arith.extf %212 : vector<8x256xbf16> to vector<8x256xf32>
    %cst_86 = arith.constant 0.949999988 : f32
    %214 = vector.broadcast %cst_86 : f32 to vector<8x256xf32>
    %215 = arith.mulf %204, %214 : vector<8x256xf32>
    %216 = arith.mulf %213, %3 : vector<8x256xf32>
    %217 = arith.addf %215, %216 : vector<8x256xf32>
    %cst_87 = arith.constant 1.000000e-03 : f32
    %218 = vector.broadcast %cst_87 : f32 to vector<1x1xf32>
    %219 = arith.mulf %200, %218 : vector<1x1xf32>
    %220 = vector.broadcast %219 : vector<1x1xf32> to vector<8x256xf32>
    %221 = arith.subf %217, %220 : vector<8x256xf32>
    %cst_88 = arith.constant 1.000000e+00 : f32
    %222 = vector.broadcast %cst_88 : f32 to vector<8x256xf32>
    %223 = arith.cmpf ogt, %221, %222 : vector<8x256xf32>
    %224 = arith.extui %223 : vector<8x256xi1> to vector<8x256xi32>
    %225 = arith.sitofp %224 : vector<8x256xi32> to vector<8x256xf32>
    %cst_89 = arith.constant dense<0.000000e+00> : vector<256xf32>
    %226 = vector.multi_reduction <add>, %225, %cst_89 [0] : vector<8x256xf32> to vector<256xf32>
    %227 = vector.shape_cast %226 : vector<256xf32> to vector<1x256xf32>
    %cst_90 = arith.constant dense<0.000000e+00> : vector<1xf32>
    %228 = vector.multi_reduction <add>, %227, %cst_90 [1] : vector<1x256xf32> to vector<1xf32>
    %229 = vector.shape_cast %228 : vector<1xf32> to vector<1x1xf32>
    %cst_91 = arith.constant 1.000000e+01 : f32
    %230 = vector.broadcast %cst_91 : f32 to vector<1x1xf32>
    %231 = arith.mulf %229, %230 : vector<1x1xf32>
    %232 = arith.addf %200, %231 : vector<1x1xf32>
    %cst_92 = arith.constant 0.983333349 : f32
    %233 = vector.broadcast %cst_92 : f32 to vector<1x1xf32>
    %234 = arith.mulf %232, %233 : vector<1x1xf32>
    %cst_93 = arith.constant 0.000000e+00 : f32
    %235 = vector.broadcast %cst_93 : f32 to vector<8x256xf32>
    %236 = arith.select %223, %235, %221 : vector<8x256xi1>, vector<8x256xf32>
    %cst_94 = arith.constant 0.000000e+00 : f32
    %237 = vector.broadcast %cst_94 : f32 to vector<8x256xf32>
    %238 = arith.maximumf %236, %237 : vector<8x256xf32>
    %239 = arith.truncf %225 : vector<8x256xf32> to vector<8x256xbf16>
    %240 = arith.index_cast %c6_i32 : i32 to index
    %c0_95 = arith.constant 0 : index
    %c0_96 = arith.constant 0 : index
    %241 = vector.load %arg5[%240, %c0_95, %c0_96] : memref<16x8x256xbf16, #tpu.memory_space<vmem>>, vector<1x8x256xbf16>
    %242 = vector.shape_cast %241 : vector<1x8x256xbf16> to vector<8x256xbf16>
    %243 = vector.shape_cast %239 : vector<8x256xbf16> to vector<1x8x256xbf16>
    tpu.vector_store %arg5[%240, %c0_95, %c0_96], %243 {strides = array<i32>} : memref<16x8x256xbf16, #tpu.memory_space<vmem>>, vector<1x8x256xbf16>,
    %c7_i32 = arith.constant 7 : i32
    %244 = arith.index_cast %c7_i32 : i32 to index
    %c0_97 = arith.constant 0 : index
    %c0_98 = arith.constant 0 : index
    %245 = vector.load %arg1[%244, %c0_97, %c0_98] : memref<16x8x256xbf16, #tpu.memory_space<vmem>>, vector<1x8x256xbf16>
    %246 = vector.shape_cast %245 : vector<1x8x256xbf16> to vector<8x256xbf16>
    %247 = arith.extf %246 : vector<8x256xbf16> to vector<8x256xf32>
    %cst_99 = arith.constant 0.949999988 : f32
    %248 = vector.broadcast %cst_99 : f32 to vector<8x256xf32>
    %249 = arith.mulf %238, %248 : vector<8x256xf32>
    %250 = arith.mulf %247, %3 : vector<8x256xf32>
    %251 = arith.addf %249, %250 : vector<8x256xf32>
    %cst_100 = arith.constant 1.000000e-03 : f32
    %252 = vector.broadcast %cst_100 : f32 to vector<1x1xf32>
    %253 = arith.mulf %234, %252 : vector<1x1xf32>
    %254 = vector.broadcast %253 : vector<1x1xf32> to vector<8x256xf32>
    %255 = arith.subf %251, %254 : vector<8x256xf32>
    %cst_101 = arith.constant 1.000000e+00 : f32
    %256 = vector.broadcast %cst_101 : f32 to vector<8x256xf32>
    %257 = arith.cmpf ogt, %255, %256 : vector<8x256xf32>
    %258 = arith.extui %257 : vector<8x256xi1> to vector<8x256xi32>
    %259 = arith.sitofp %258 : vector<8x256xi32> to vector<8x256xf32>
    %cst_102 = arith.constant dense<0.000000e+00> : vector<256xf32>
    %260 = vector.multi_reduction <add>, %259, %cst_102 [0] : vector<8x256xf32> to vector<256xf32>
    %261 = vector.shape_cast %260 : vector<256xf32> to vector<1x256xf32>
    %cst_103 = arith.constant dense<0.000000e+00> : vector<1xf32>
    %262 = vector.multi_reduction <add>, %261, %cst_103 [1] : vector<1x256xf32> to vector<1xf32>
    %263 = vector.shape_cast %262 : vector<1xf32> to vector<1x1xf32>
    %cst_104 = arith.constant 1.000000e+01 : f32
    %264 = vector.broadcast %cst_104 : f32 to vector<1x1xf32>
    %265 = arith.mulf %263, %264 : vector<1x1xf32>
    %266 = arith.addf %234, %265 : vector<1x1xf32>
    %cst_105 = arith.constant 0.983333349 : f32
    %267 = vector.broadcast %cst_105 : f32 to vector<1x1xf32>
    %268 = arith.mulf %266, %267 : vector<1x1xf32>
    %cst_106 = arith.constant 0.000000e+00 : f32
    %269 = vector.broadcast %cst_106 : f32 to vector<8x256xf32>
    %270 = arith.select %257, %269, %255 : vector<8x256xi1>, vector<8x256xf32>
    %cst_107 = arith.constant 0.000000e+00 : f32
    %271 = vector.broadcast %cst_107 : f32 to vector<8x256xf32>
    %272 = arith.maximumf %270, %271 : vector<8x256xf32>
    %273 = arith.truncf %259 : vector<8x256xf32> to vector<8x256xbf16>
    %274 = arith.index_cast %c7_i32 : i32 to index
    %c0_108 = arith.constant 0 : index
    %c0_109 = arith.constant 0 : index
    %275 = vector.load %arg5[%274, %c0_108, %c0_109] : memref<16x8x256xbf16, #tpu.memory_space<vmem>>, vector<1x8x256xbf16>
    %276 = vector.shape_cast %275 : vector<1x8x256xbf16> to vector<8x256xbf16>
    %277 = vector.shape_cast %273 : vector<8x256xbf16> to vector<1x8x256xbf16>
    tpu.vector_store %arg5[%274, %c0_108, %c0_109], %277 {strides = array<i32>} : memref<16x8x256xbf16, #tpu.memory_space<vmem>>, vector<1x8x256xbf16>,
    %c8_i32 = arith.constant 8 : i32
    %278 = arith.index_cast %c8_i32 : i32 to index
    %c0_110 = arith.constant 0 : index
    %c0_111 = arith.constant 0 : index
    %279 = vector.load %arg1[%278, %c0_110, %c0_111] : memref<16x8x256xbf16, #tpu.memory_space<vmem>>, vector<1x8x256xbf16>
    %280 = vector.shape_cast %279 : vector<1x8x256xbf16> to vector<8x256xbf16>
    %281 = arith.extf %280 : vector<8x256xbf16> to vector<8x256xf32>
    %cst_112 = arith.constant 0.949999988 : f32
    %282 = vector.broadcast %cst_112 : f32 to vector<8x256xf32>
    %283 = arith.mulf %272, %282 : vector<8x256xf32>
    %284 = arith.mulf %281, %3 : vector<8x256xf32>
    %285 = arith.addf %283, %284 : vector<8x256xf32>
    %cst_113 = arith.constant 1.000000e-03 : f32
    %286 = vector.broadcast %cst_113 : f32 to vector<1x1xf32>
    %287 = arith.mulf %268, %286 : vector<1x1xf32>
    %288 = vector.broadcast %287 : vector<1x1xf32> to vector<8x256xf32>
    %289 = arith.subf %285, %288 : vector<8x256xf32>
    %cst_114 = arith.constant 1.000000e+00 : f32
    %290 = vector.broadcast %cst_114 : f32 to vector<8x256xf32>
    %291 = arith.cmpf ogt, %289, %290 : vector<8x256xf32>
    %292 = arith.extui %291 : vector<8x256xi1> to vector<8x256xi32>
    %293 = arith.sitofp %292 : vector<8x256xi32> to vector<8x256xf32>
    %cst_115 = arith.constant dense<0.000000e+00> : vector<256xf32>
    %294 = vector.multi_reduction <add>, %293, %cst_115 [0] : vector<8x256xf32> to vector<256xf32>
    %295 = vector.shape_cast %294 : vector<256xf32> to vector<1x256xf32>
    %cst_116 = arith.constant dense<0.000000e+00> : vector<1xf32>
    %296 = vector.multi_reduction <add>, %295, %cst_116 [1] : vector<1x256xf32> to vector<1xf32>
    %297 = vector.shape_cast %296 : vector<1xf32> to vector<1x1xf32>
    %cst_117 = arith.constant 1.000000e+01 : f32
    %298 = vector.broadcast %cst_117 : f32 to vector<1x1xf32>
    %299 = arith.mulf %297, %298 : vector<1x1xf32>
    %300 = arith.addf %268, %299 : vector<1x1xf32>
    %cst_118 = arith.constant 0.983333349 : f32
    %301 = vector.broadcast %cst_118 : f32 to vector<1x1xf32>
    %302 = arith.mulf %300, %301 : vector<1x1xf32>
    %cst_119 = arith.constant 0.000000e+00 : f32
    %303 = vector.broadcast %cst_119 : f32 to vector<8x256xf32>
    %304 = arith.select %291, %303, %289 : vector<8x256xi1>, vector<8x256xf32>
    %cst_120 = arith.constant 0.000000e+00 : f32
    %305 = vector.broadcast %cst_120 : f32 to vector<8x256xf32>
    %306 = arith.maximumf %304, %305 : vector<8x256xf32>
    %307 = arith.truncf %293 : vector<8x256xf32> to vector<8x256xbf16>
    %308 = arith.index_cast %c8_i32 : i32 to index
    %c0_121 = arith.constant 0 : index
    %c0_122 = arith.constant 0 : index
    %309 = vector.load %arg5[%308, %c0_121, %c0_122] : memref<16x8x256xbf16, #tpu.memory_space<vmem>>, vector<1x8x256xbf16>
    %310 = vector.shape_cast %309 : vector<1x8x256xbf16> to vector<8x256xbf16>
    %311 = vector.shape_cast %307 : vector<8x256xbf16> to vector<1x8x256xbf16>
    tpu.vector_store %arg5[%308, %c0_121, %c0_122], %311 {strides = array<i32>} : memref<16x8x256xbf16, #tpu.memory_space<vmem>>, vector<1x8x256xbf16>,
    %c9_i32 = arith.constant 9 : i32
    %312 = arith.index_cast %c9_i32 : i32 to index
    %c0_123 = arith.constant 0 : index
    %c0_124 = arith.constant 0 : index
    %313 = vector.load %arg1[%312, %c0_123, %c0_124] : memref<16x8x256xbf16, #tpu.memory_space<vmem>>, vector<1x8x256xbf16>
    %314 = vector.shape_cast %313 : vector<1x8x256xbf16> to vector<8x256xbf16>
    %315 = arith.extf %314 : vector<8x256xbf16> to vector<8x256xf32>
    %cst_125 = arith.constant 0.949999988 : f32
    %316 = vector.broadcast %cst_125 : f32 to vector<8x256xf32>
    %317 = arith.mulf %306, %316 : vector<8x256xf32>
    %318 = arith.mulf %315, %3 : vector<8x256xf32>
    %319 = arith.addf %317, %318 : vector<8x256xf32>
    %cst_126 = arith.constant 1.000000e-03 : f32
    %320 = vector.broadcast %cst_126 : f32 to vector<1x1xf32>
    %321 = arith.mulf %302, %320 : vector<1x1xf32>
    %322 = vector.broadcast %321 : vector<1x1xf32> to vector<8x256xf32>
    %323 = arith.subf %319, %322 : vector<8x256xf32>
    %cst_127 = arith.constant 1.000000e+00 : f32
    %324 = vector.broadcast %cst_127 : f32 to vector<8x256xf32>
    %325 = arith.cmpf ogt, %323, %324 : vector<8x256xf32>
    %326 = arith.extui %325 : vector<8x256xi1> to vector<8x256xi32>
    %327 = arith.sitofp %326 : vector<8x256xi32> to vector<8x256xf32>
    %cst_128 = arith.constant dense<0.000000e+00> : vector<256xf32>
    %328 = vector.multi_reduction <add>, %327, %cst_128 [0] : vector<8x256xf32> to vector<256xf32>
    %329 = vector.shape_cast %328 : vector<256xf32> to vector<1x256xf32>
    %cst_129 = arith.constant dense<0.000000e+00> : vector<1xf32>
    %330 = vector.multi_reduction <add>, %329, %cst_129 [1] : vector<1x256xf32> to vector<1xf32>
    %331 = vector.shape_cast %330 : vector<1xf32> to vector<1x1xf32>
    %cst_130 = arith.constant 1.000000e+01 : f32
    %332 = vector.broadcast %cst_130 : f32 to vector<1x1xf32>
    %333 = arith.mulf %331, %332 : vector<1x1xf32>
    %334 = arith.addf %302, %333 : vector<1x1xf32>
    %cst_131 = arith.constant 0.983333349 : f32
    %335 = vector.broadcast %cst_131 : f32 to vector<1x1xf32>
    %336 = arith.mulf %334, %335 : vector<1x1xf32>
    %cst_132 = arith.constant 0.000000e+00 : f32
    %337 = vector.broadcast %cst_132 : f32 to vector<8x256xf32>
    %338 = arith.select %325, %337, %323 : vector<8x256xi1>, vector<8x256xf32>
    %cst_133 = arith.constant 0.000000e+00 : f32
    %339 = vector.broadcast %cst_133 : f32 to vector<8x256xf32>
    %340 = arith.maximumf %338, %339 : vector<8x256xf32>
    %341 = arith.truncf %327 : vector<8x256xf32> to vector<8x256xbf16>
    %342 = arith.index_cast %c9_i32 : i32 to index
    %c0_134 = arith.constant 0 : index
    %c0_135 = arith.constant 0 : index
    %343 = vector.load %arg5[%342, %c0_134, %c0_135] : memref<16x8x256xbf16, #tpu.memory_space<vmem>>, vector<1x8x256xbf16>
    %344 = vector.shape_cast %343 : vector<1x8x256xbf16> to vector<8x256xbf16>
    %345 = vector.shape_cast %341 : vector<8x256xbf16> to vector<1x8x256xbf16>
    tpu.vector_store %arg5[%342, %c0_134, %c0_135], %345 {strides = array<i32>} : memref<16x8x256xbf16, #tpu.memory_space<vmem>>, vector<1x8x256xbf16>,
    %c10_i32 = arith.constant 10 : i32
    %346 = arith.index_cast %c10_i32 : i32 to index
    %c0_136 = arith.constant 0 : index
    %c0_137 = arith.constant 0 : index
    %347 = vector.load %arg1[%346, %c0_136, %c0_137] : memref<16x8x256xbf16, #tpu.memory_space<vmem>>, vector<1x8x256xbf16>
    %348 = vector.shape_cast %347 : vector<1x8x256xbf16> to vector<8x256xbf16>
    %349 = arith.extf %348 : vector<8x256xbf16> to vector<8x256xf32>
    %cst_138 = arith.constant 0.949999988 : f32
    %350 = vector.broadcast %cst_138 : f32 to vector<8x256xf32>
    %351 = arith.mulf %340, %350 : vector<8x256xf32>
    %352 = arith.mulf %349, %3 : vector<8x256xf32>
    %353 = arith.addf %351, %352 : vector<8x256xf32>
    %cst_139 = arith.constant 1.000000e-03 : f32
    %354 = vector.broadcast %cst_139 : f32 to vector<1x1xf32>
    %355 = arith.mulf %336, %354 : vector<1x1xf32>
    %356 = vector.broadcast %355 : vector<1x1xf32> to vector<8x256xf32>
    %357 = arith.subf %353, %356 : vector<8x256xf32>
    %cst_140 = arith.constant 1.000000e+00 : f32
    %358 = vector.broadcast %cst_140 : f32 to vector<8x256xf32>
    %359 = arith.cmpf ogt, %357, %358 : vector<8x256xf32>
    %360 = arith.extui %359 : vector<8x256xi1> to vector<8x256xi32>
    %361 = arith.sitofp %360 : vector<8x256xi32> to vector<8x256xf32>
    %cst_141 = arith.constant dense<0.000000e+00> : vector<256xf32>
    %362 = vector.multi_reduction <add>, %361, %cst_141 [0] : vector<8x256xf32> to vector<256xf32>
    %363 = vector.shape_cast %362 : vector<256xf32> to vector<1x256xf32>
    %cst_142 = arith.constant dense<0.000000e+00> : vector<1xf32>
    %364 = vector.multi_reduction <add>, %363, %cst_142 [1] : vector<1x256xf32> to vector<1xf32>
    %365 = vector.shape_cast %364 : vector<1xf32> to vector<1x1xf32>
    %cst_143 = arith.constant 1.000000e+01 : f32
    %366 = vector.broadcast %cst_143 : f32 to vector<1x1xf32>
    %367 = arith.mulf %365, %366 : vector<1x1xf32>
    %368 = arith.addf %336, %367 : vector<1x1xf32>
    %cst_144 = arith.constant 0.983333349 : f32
    %369 = vector.broadcast %cst_144 : f32 to vector<1x1xf32>
    %370 = arith.mulf %368, %369 : vector<1x1xf32>
    %cst_145 = arith.constant 0.000000e+00 : f32
    %371 = vector.broadcast %cst_145 : f32 to vector<8x256xf32>
    %372 = arith.select %359, %371, %357 : vector<8x256xi1>, vector<8x256xf32>
    %cst_146 = arith.constant 0.000000e+00 : f32
    %373 = vector.broadcast %cst_146 : f32 to vector<8x256xf32>
    %374 = arith.maximumf %372, %373 : vector<8x256xf32>
    %375 = arith.truncf %361 : vector<8x256xf32> to vector<8x256xbf16>
    %376 = arith.index_cast %c10_i32 : i32 to index
    %c0_147 = arith.constant 0 : index
    %c0_148 = arith.constant 0 : index
    %377 = vector.load %arg5[%376, %c0_147, %c0_148] : memref<16x8x256xbf16, #tpu.memory_space<vmem>>, vector<1x8x256xbf16>
    %378 = vector.shape_cast %377 : vector<1x8x256xbf16> to vector<8x256xbf16>
    %379 = vector.shape_cast %375 : vector<8x256xbf16> to vector<1x8x256xbf16>
    tpu.vector_store %arg5[%376, %c0_147, %c0_148], %379 {strides = array<i32>} : memref<16x8x256xbf16, #tpu.memory_space<vmem>>, vector<1x8x256xbf16>,
    %c11_i32 = arith.constant 11 : i32
    %380 = arith.index_cast %c11_i32 : i32 to index
    %c0_149 = arith.constant 0 : index
    %c0_150 = arith.constant 0 : index
    %381 = vector.load %arg1[%380, %c0_149, %c0_150] : memref<16x8x256xbf16, #tpu.memory_space<vmem>>, vector<1x8x256xbf16>
    %382 = vector.shape_cast %381 : vector<1x8x256xbf16> to vector<8x256xbf16>
    %383 = arith.extf %382 : vector<8x256xbf16> to vector<8x256xf32>
    %cst_151 = arith.constant 0.949999988 : f32
    %384 = vector.broadcast %cst_151 : f32 to vector<8x256xf32>
    %385 = arith.mulf %374, %384 : vector<8x256xf32>
    %386 = arith.mulf %383, %3 : vector<8x256xf32>
    %387 = arith.addf %385, %386 : vector<8x256xf32>
    %cst_152 = arith.constant 1.000000e-03 : f32
    %388 = vector.broadcast %cst_152 : f32 to vector<1x1xf32>
    %389 = arith.mulf %370, %388 : vector<1x1xf32>
    %390 = vector.broadcast %389 : vector<1x1xf32> to vector<8x256xf32>
    %391 = arith.subf %387, %390 : vector<8x256xf32>
    %cst_153 = arith.constant 1.000000e+00 : f32
    %392 = vector.broadcast %cst_153 : f32 to vector<8x256xf32>
    %393 = arith.cmpf ogt, %391, %392 : vector<8x256xf32>
    %394 = arith.extui %393 : vector<8x256xi1> to vector<8x256xi32>
    %395 = arith.sitofp %394 : vector<8x256xi32> to vector<8x256xf32>
    %cst_154 = arith.constant dense<0.000000e+00> : vector<256xf32>
    %396 = vector.multi_reduction <add>, %395, %cst_154 [0] : vector<8x256xf32> to vector<256xf32>
    %397 = vector.shape_cast %396 : vector<256xf32> to vector<1x256xf32>
    %cst_155 = arith.constant dense<0.000000e+00> : vector<1xf32>
    %398 = vector.multi_reduction <add>, %397, %cst_155 [1] : vector<1x256xf32> to vector<1xf32>
    %399 = vector.shape_cast %398 : vector<1xf32> to vector<1x1xf32>
    %cst_156 = arith.constant 1.000000e+01 : f32
    %400 = vector.broadcast %cst_156 : f32 to vector<1x1xf32>
    %401 = arith.mulf %399, %400 : vector<1x1xf32>
    %402 = arith.addf %370, %401 : vector<1x1xf32>
    %cst_157 = arith.constant 0.983333349 : f32
    %403 = vector.broadcast %cst_157 : f32 to vector<1x1xf32>
    %404 = arith.mulf %402, %403 : vector<1x1xf32>
    %cst_158 = arith.constant 0.000000e+00 : f32
    %405 = vector.broadcast %cst_158 : f32 to vector<8x256xf32>
    %406 = arith.select %393, %405, %391 : vector<8x256xi1>, vector<8x256xf32>
    %cst_159 = arith.constant 0.000000e+00 : f32
    %407 = vector.broadcast %cst_159 : f32 to vector<8x256xf32>
    %408 = arith.maximumf %406, %407 : vector<8x256xf32>
    %409 = arith.truncf %395 : vector<8x256xf32> to vector<8x256xbf16>
    %410 = arith.index_cast %c11_i32 : i32 to index
    %c0_160 = arith.constant 0 : index
    %c0_161 = arith.constant 0 : index
    %411 = vector.load %arg5[%410, %c0_160, %c0_161] : memref<16x8x256xbf16, #tpu.memory_space<vmem>>, vector<1x8x256xbf16>
    %412 = vector.shape_cast %411 : vector<1x8x256xbf16> to vector<8x256xbf16>
    %413 = vector.shape_cast %409 : vector<8x256xbf16> to vector<1x8x256xbf16>
    tpu.vector_store %arg5[%410, %c0_160, %c0_161], %413 {strides = array<i32>} : memref<16x8x256xbf16, #tpu.memory_space<vmem>>, vector<1x8x256xbf16>,
    %c12_i32 = arith.constant 12 : i32
    %414 = arith.index_cast %c12_i32 : i32 to index
    %c0_162 = arith.constant 0 : index
    %c0_163 = arith.constant 0 : index
    %415 = vector.load %arg1[%414, %c0_162, %c0_163] : memref<16x8x256xbf16, #tpu.memory_space<vmem>>, vector<1x8x256xbf16>
    %416 = vector.shape_cast %415 : vector<1x8x256xbf16> to vector<8x256xbf16>
    %417 = arith.extf %416 : vector<8x256xbf16> to vector<8x256xf32>
    %cst_164 = arith.constant 0.949999988 : f32
    %418 = vector.broadcast %cst_164 : f32 to vector<8x256xf32>
    %419 = arith.mulf %408, %418 : vector<8x256xf32>
    %420 = arith.mulf %417, %3 : vector<8x256xf32>
    %421 = arith.addf %419, %420 : vector<8x256xf32>
    %cst_165 = arith.constant 1.000000e-03 : f32
    %422 = vector.broadcast %cst_165 : f32 to vector<1x1xf32>
    %423 = arith.mulf %404, %422 : vector<1x1xf32>
    %424 = vector.broadcast %423 : vector<1x1xf32> to vector<8x256xf32>
    %425 = arith.subf %421, %424 : vector<8x256xf32>
    %cst_166 = arith.constant 1.000000e+00 : f32
    %426 = vector.broadcast %cst_166 : f32 to vector<8x256xf32>
    %427 = arith.cmpf ogt, %425, %426 : vector<8x256xf32>
    %428 = arith.extui %427 : vector<8x256xi1> to vector<8x256xi32>
    %429 = arith.sitofp %428 : vector<8x256xi32> to vector<8x256xf32>
    %cst_167 = arith.constant dense<0.000000e+00> : vector<256xf32>
    %430 = vector.multi_reduction <add>, %429, %cst_167 [0] : vector<8x256xf32> to vector<256xf32>
    %431 = vector.shape_cast %430 : vector<256xf32> to vector<1x256xf32>
    %cst_168 = arith.constant dense<0.000000e+00> : vector<1xf32>
    %432 = vector.multi_reduction <add>, %431, %cst_168 [1] : vector<1x256xf32> to vector<1xf32>
    %433 = vector.shape_cast %432 : vector<1xf32> to vector<1x1xf32>
    %cst_169 = arith.constant 1.000000e+01 : f32
    %434 = vector.broadcast %cst_169 : f32 to vector<1x1xf32>
    %435 = arith.mulf %433, %434 : vector<1x1xf32>
    %436 = arith.addf %404, %435 : vector<1x1xf32>
    %cst_170 = arith.constant 0.983333349 : f32
    %437 = vector.broadcast %cst_170 : f32 to vector<1x1xf32>
    %438 = arith.mulf %436, %437 : vector<1x1xf32>
    %cst_171 = arith.constant 0.000000e+00 : f32
    %439 = vector.broadcast %cst_171 : f32 to vector<8x256xf32>
    %440 = arith.select %427, %439, %425 : vector<8x256xi1>, vector<8x256xf32>
    %cst_172 = arith.constant 0.000000e+00 : f32
    %441 = vector.broadcast %cst_172 : f32 to vector<8x256xf32>
    %442 = arith.maximumf %440, %441 : vector<8x256xf32>
    %443 = arith.truncf %429 : vector<8x256xf32> to vector<8x256xbf16>
    %444 = arith.index_cast %c12_i32 : i32 to index
    %c0_173 = arith.constant 0 : index
    %c0_174 = arith.constant 0 : index
    %445 = vector.load %arg5[%444, %c0_173, %c0_174] : memref<16x8x256xbf16, #tpu.memory_space<vmem>>, vector<1x8x256xbf16>
    %446 = vector.shape_cast %445 : vector<1x8x256xbf16> to vector<8x256xbf16>
    %447 = vector.shape_cast %443 : vector<8x256xbf16> to vector<1x8x256xbf16>
    tpu.vector_store %arg5[%444, %c0_173, %c0_174], %447 {strides = array<i32>} : memref<16x8x256xbf16, #tpu.memory_space<vmem>>, vector<1x8x256xbf16>,
    %c13_i32 = arith.constant 13 : i32
    %448 = arith.index_cast %c13_i32 : i32 to index
    %c0_175 = arith.constant 0 : index
    %c0_176 = arith.constant 0 : index
    %449 = vector.load %arg1[%448, %c0_175, %c0_176] : memref<16x8x256xbf16, #tpu.memory_space<vmem>>, vector<1x8x256xbf16>
    %450 = vector.shape_cast %449 : vector<1x8x256xbf16> to vector<8x256xbf16>
    %451 = arith.extf %450 : vector<8x256xbf16> to vector<8x256xf32>
    %cst_177 = arith.constant 0.949999988 : f32
    %452 = vector.broadcast %cst_177 : f32 to vector<8x256xf32>
    %453 = arith.mulf %442, %452 : vector<8x256xf32>
    %454 = arith.mulf %451, %3 : vector<8x256xf32>
    %455 = arith.addf %453, %454 : vector<8x256xf32>
    %cst_178 = arith.constant 1.000000e-03 : f32
    %456 = vector.broadcast %cst_178 : f32 to vector<1x1xf32>
    %457 = arith.mulf %438, %456 : vector<1x1xf32>
    %458 = vector.broadcast %457 : vector<1x1xf32> to vector<8x256xf32>
    %459 = arith.subf %455, %458 : vector<8x256xf32>
    %cst_179 = arith.constant 1.000000e+00 : f32
    %460 = vector.broadcast %cst_179 : f32 to vector<8x256xf32>
    %461 = arith.cmpf ogt, %459, %460 : vector<8x256xf32>
    %462 = arith.extui %461 : vector<8x256xi1> to vector<8x256xi32>
    %463 = arith.sitofp %462 : vector<8x256xi32> to vector<8x256xf32>
    %cst_180 = arith.constant dense<0.000000e+00> : vector<256xf32>
    %464 = vector.multi_reduction <add>, %463, %cst_180 [0] : vector<8x256xf32> to vector<256xf32>
    %465 = vector.shape_cast %464 : vector<256xf32> to vector<1x256xf32>
    %cst_181 = arith.constant dense<0.000000e+00> : vector<1xf32>
    %466 = vector.multi_reduction <add>, %465, %cst_181 [1] : vector<1x256xf32> to vector<1xf32>
    %467 = vector.shape_cast %466 : vector<1xf32> to vector<1x1xf32>
    %cst_182 = arith.constant 1.000000e+01 : f32
    %468 = vector.broadcast %cst_182 : f32 to vector<1x1xf32>
    %469 = arith.mulf %467, %468 : vector<1x1xf32>
    %470 = arith.addf %438, %469 : vector<1x1xf32>
    %cst_183 = arith.constant 0.983333349 : f32
    %471 = vector.broadcast %cst_183 : f32 to vector<1x1xf32>
    %472 = arith.mulf %470, %471 : vector<1x1xf32>
    %cst_184 = arith.constant 0.000000e+00 : f32
    %473 = vector.broadcast %cst_184 : f32 to vector<8x256xf32>
    %474 = arith.select %461, %473, %459 : vector<8x256xi1>, vector<8x256xf32>
    %cst_185 = arith.constant 0.000000e+00 : f32
    %475 = vector.broadcast %cst_185 : f32 to vector<8x256xf32>
    %476 = arith.maximumf %474, %475 : vector<8x256xf32>
    %477 = arith.truncf %463 : vector<8x256xf32> to vector<8x256xbf16>
    %478 = arith.index_cast %c13_i32 : i32 to index
    %c0_186 = arith.constant 0 : index
    %c0_187 = arith.constant 0 : index
    %479 = vector.load %arg5[%478, %c0_186, %c0_187] : memref<16x8x256xbf16, #tpu.memory_space<vmem>>, vector<1x8x256xbf16>
    %480 = vector.shape_cast %479 : vector<1x8x256xbf16> to vector<8x256xbf16>
    %481 = vector.shape_cast %477 : vector<8x256xbf16> to vector<1x8x256xbf16>
    tpu.vector_store %arg5[%478, %c0_186, %c0_187], %481 {strides = array<i32>} : memref<16x8x256xbf16, #tpu.memory_space<vmem>>, vector<1x8x256xbf16>,
    %c14_i32 = arith.constant 14 : i32
    %482 = arith.index_cast %c14_i32 : i32 to index
    %c0_188 = arith.constant 0 : index
    %c0_189 = arith.constant 0 : index
    %483 = vector.load %arg1[%482, %c0_188, %c0_189] : memref<16x8x256xbf16, #tpu.memory_space<vmem>>, vector<1x8x256xbf16>
    %484 = vector.shape_cast %483 : vector<1x8x256xbf16> to vector<8x256xbf16>
    %485 = arith.extf %484 : vector<8x256xbf16> to vector<8x256xf32>
    %cst_190 = arith.constant 0.949999988 : f32
    %486 = vector.broadcast %cst_190 : f32 to vector<8x256xf32>
    %487 = arith.mulf %476, %486 : vector<8x256xf32>
    %488 = arith.mulf %485, %3 : vector<8x256xf32>
    %489 = arith.addf %487, %488 : vector<8x256xf32>
    %cst_191 = arith.constant 1.000000e-03 : f32
    %490 = vector.broadcast %cst_191 : f32 to vector<1x1xf32>
    %491 = arith.mulf %472, %490 : vector<1x1xf32>
    %492 = vector.broadcast %491 : vector<1x1xf32> to vector<8x256xf32>
    %493 = arith.subf %489, %492 : vector<8x256xf32>
    %cst_192 = arith.constant 1.000000e+00 : f32
    %494 = vector.broadcast %cst_192 : f32 to vector<8x256xf32>
    %495 = arith.cmpf ogt, %493, %494 : vector<8x256xf32>
    %496 = arith.extui %495 : vector<8x256xi1> to vector<8x256xi32>
    %497 = arith.sitofp %496 : vector<8x256xi32> to vector<8x256xf32>
    %cst_193 = arith.constant dense<0.000000e+00> : vector<256xf32>
    %498 = vector.multi_reduction <add>, %497, %cst_193 [0] : vector<8x256xf32> to vector<256xf32>
    %499 = vector.shape_cast %498 : vector<256xf32> to vector<1x256xf32>
    %cst_194 = arith.constant dense<0.000000e+00> : vector<1xf32>
    %500 = vector.multi_reduction <add>, %499, %cst_194 [1] : vector<1x256xf32> to vector<1xf32>
    %501 = vector.shape_cast %500 : vector<1xf32> to vector<1x1xf32>
    %cst_195 = arith.constant 1.000000e+01 : f32
    %502 = vector.broadcast %cst_195 : f32 to vector<1x1xf32>
    %503 = arith.mulf %501, %502 : vector<1x1xf32>
    %504 = arith.addf %472, %503 : vector<1x1xf32>
    %cst_196 = arith.constant 0.983333349 : f32
    %505 = vector.broadcast %cst_196 : f32 to vector<1x1xf32>
    %506 = arith.mulf %504, %505 : vector<1x1xf32>
    %cst_197 = arith.constant 0.000000e+00 : f32
    %507 = vector.broadcast %cst_197 : f32 to vector<8x256xf32>
    %508 = arith.select %495, %507, %493 : vector<8x256xi1>, vector<8x256xf32>
    %cst_198 = arith.constant 0.000000e+00 : f32
    %509 = vector.broadcast %cst_198 : f32 to vector<8x256xf32>
    %510 = arith.maximumf %508, %509 : vector<8x256xf32>
    %511 = arith.truncf %497 : vector<8x256xf32> to vector<8x256xbf16>
    %512 = arith.index_cast %c14_i32 : i32 to index
    %c0_199 = arith.constant 0 : index
    %c0_200 = arith.constant 0 : index
    %513 = vector.load %arg5[%512, %c0_199, %c0_200] : memref<16x8x256xbf16, #tpu.memory_space<vmem>>, vector<1x8x256xbf16>
    %514 = vector.shape_cast %513 : vector<1x8x256xbf16> to vector<8x256xbf16>
    %515 = vector.shape_cast %511 : vector<8x256xbf16> to vector<1x8x256xbf16>
    tpu.vector_store %arg5[%512, %c0_199, %c0_200], %515 {strides = array<i32>} : memref<16x8x256xbf16, #tpu.memory_space<vmem>>, vector<1x8x256xbf16>,
    %c15_i32 = arith.constant 15 : i32
    %516 = arith.index_cast %c15_i32 : i32 to index
    %c0_201 = arith.constant 0 : index
    %c0_202 = arith.constant 0 : index
    %517 = vector.load %arg1[%516, %c0_201, %c0_202] : memref<16x8x256xbf16, #tpu.memory_space<vmem>>, vector<1x8x256xbf16>
    %518 = vector.shape_cast %517 : vector<1x8x256xbf16> to vector<8x256xbf16>
    %519 = arith.extf %518 : vector<8x256xbf16> to vector<8x256xf32>
    %cst_203 = arith.constant 0.949999988 : f32
    %520 = vector.broadcast %cst_203 : f32 to vector<8x256xf32>
    %521 = arith.mulf %510, %520 : vector<8x256xf32>
    %522 = arith.mulf %519, %3 : vector<8x256xf32>
    %523 = arith.addf %521, %522 : vector<8x256xf32>
    %cst_204 = arith.constant 1.000000e-03 : f32
    %524 = vector.broadcast %cst_204 : f32 to vector<1x1xf32>
    %525 = arith.mulf %506, %524 : vector<1x1xf32>
    %526 = vector.broadcast %525 : vector<1x1xf32> to vector<8x256xf32>
    %527 = arith.subf %523, %526 : vector<8x256xf32>
    %cst_205 = arith.constant 1.000000e+00 : f32
    %528 = vector.broadcast %cst_205 : f32 to vector<8x256xf32>
    %529 = arith.cmpf ogt, %527, %528 : vector<8x256xf32>
    %530 = arith.extui %529 : vector<8x256xi1> to vector<8x256xi32>
    %531 = arith.sitofp %530 : vector<8x256xi32> to vector<8x256xf32>
    %cst_206 = arith.constant dense<0.000000e+00> : vector<256xf32>
    %532 = vector.multi_reduction <add>, %531, %cst_206 [0] : vector<8x256xf32> to vector<256xf32>
    %533 = vector.shape_cast %532 : vector<256xf32> to vector<1x256xf32>
    %cst_207 = arith.constant dense<0.000000e+00> : vector<1xf32>
    %534 = vector.multi_reduction <add>, %533, %cst_207 [1] : vector<1x256xf32> to vector<1xf32>
    %535 = vector.shape_cast %534 : vector<1xf32> to vector<1x1xf32>
    %cst_208 = arith.constant 1.000000e+01 : f32
    %536 = vector.broadcast %cst_208 : f32 to vector<1x1xf32>
    %537 = arith.mulf %535, %536 : vector<1x1xf32>
    %538 = arith.addf %506, %537 : vector<1x1xf32>
    %cst_209 = arith.constant 0.983333349 : f32
    %539 = vector.broadcast %cst_209 : f32 to vector<1x1xf32>
    %540 = arith.mulf %538, %539 : vector<1x1xf32>
    %cst_210 = arith.constant 0.000000e+00 : f32
    %541 = vector.broadcast %cst_210 : f32 to vector<8x256xf32>
    %542 = arith.select %529, %541, %527 : vector<8x256xi1>, vector<8x256xf32>
    %cst_211 = arith.constant 0.000000e+00 : f32
    %543 = vector.broadcast %cst_211 : f32 to vector<8x256xf32>
    %544 = arith.maximumf %542, %543 : vector<8x256xf32>
    %545 = arith.truncf %531 : vector<8x256xf32> to vector<8x256xbf16>
    %546 = arith.index_cast %c15_i32 : i32 to index
    %c0_212 = arith.constant 0 : index
    %c0_213 = arith.constant 0 : index
    %547 = vector.load %arg5[%546, %c0_212, %c0_213] : memref<16x8x256xbf16, #tpu.memory_space<vmem>>, vector<1x8x256xbf16>
    %548 = vector.shape_cast %547 : vector<1x8x256xbf16> to vector<8x256xbf16>
    %549 = vector.shape_cast %545 : vector<8x256xbf16> to vector<1x8x256xbf16>
    tpu.vector_store %arg5[%546, %c0_212, %c0_213], %549 {strides = array<i32>} : memref<16x8x256xbf16, #tpu.memory_space<vmem>>, vector<1x8x256xbf16>,
    %c16_i32 = arith.constant 16 : i32
    %c0_214 = arith.constant 0 : index
    %c0_215 = arith.constant 0 : index
    %550 = vector.load %arg6[%c0_214, %c0_215] : memref<8x256xf32, #tpu.memory_space<vmem>>, vector<8x256xf32>
    tpu.vector_store %arg6[%c0_214, %c0_215], %544 {strides = array<i32>} : memref<8x256xf32, #tpu.memory_space<vmem>>, vector<8x256xf32>,
    %c0_216 = arith.constant 0 : index
    %c0_217 = arith.constant 0 : index
    %551 = vector.load %arg7[%c0_216, %c0_217] : memref<1x1xf32, #tpu.memory_space<vmem>>, vector<1x1xf32>
    tpu.vector_store %arg7[%c0_216, %c0_217], %540 {strides = array<i32>} : memref<1x1xf32, #tpu.memory_space<vmem>>, vector<1x1xf32>,
    return
  }
  func.func @transform_0(%arg0: i32) -> (i32, i32, i32) {
    %c0_i32 = arith.constant 0 : i32
    %c0_i32_0 = arith.constant 0 : i32
    %c0_i32_1 = arith.constant 0 : i32
    return %arg0, %c0_i32, %c0_i32_0 : i32, i32, i32
  }
  func.func @transform_1(%arg0: i32) -> (i32, i32) {
    %c0_i32 = arith.constant 0 : i32
    %c0_i32_0 = arith.constant 0 : i32
    %c0_i32_1 = arith.constant 0 : i32
    return %c0_i32, %c0_i32_0 : i32, i32
  }
  func.func @transform_2(%arg0: i32) -> (i32, i32) {
    %c0_i32 = arith.constant 0 : i32
    %c0_i32_0 = arith.constant 0 : i32
    %c0_i32_1 = arith.constant 0 : i32
    return %c0_i32, %c0_i32_0 : i32, i32
  }
  func.func @transform_3(%arg0: i32) -> (i32, i32) {
    %c0_i32 = arith.constant 0 : i32
    %c0_i32_0 = arith.constant 0 : i32
    %c0_i32_1 = arith.constant 0 : i32
    return %c0_i32, %c0_i32_0 : i32, i32
  }
  func.func @transform_4(%arg0: i32) -> (i32, i32, i32) {
    %c0_i32 = arith.constant 0 : i32
    %c0_i32_0 = arith.constant 0 : i32
    %c0_i32_1 = arith.constant 0 : i32
    return %arg0, %c0_i32, %c0_i32_0 : i32, i32, i32
  }
  func.func @transform_5(%arg0: i32) -> (i32, i32) {
    %c0_i32 = arith.constant 0 : i32
    %c0_i32_0 = arith.constant 0 : i32
    %c0_i32_1 = arith.constant 0 : i32
    return %c0_i32, %c0_i32_0 : i32, i32
  }
  func.func @transform_6(%arg0: i32) -> (i32, i32) {
    %c0_i32 = arith.constant 0 : i32
    %c0_i32_0 = arith.constant 0 : i32
    %c0_i32_1 = arith.constant 0 : i32
    return %c0_i32, %c0_i32_0 : i32, i32
  }
}

</mosaic_0001>

<llo_original>
// kernel: tpu_custom_call.1
$region0: #{tpu_custom_call.1}
  #allocation0 [shape = 'u32[]', space=smem, size = 0x4, offset = 0x4, fixed_abs, tag = 'smem constant byte address 0x4 - core index']
  #allocation1 [shape = 'u32[72,128]{1,0:T(1,128)}', space=vmem, size = 0x9000, scoped, tag = 'internal scratch']
  #allocation2 [shape = 'f32[1,1]{1,0:T(1,128)S(1)}', space=vmem, size = 0x200, scoped, tag = 'scoped memory for tpu_custom_call.1']
  %s0 = inlined_call_operand.hbm [shape: bf16[64,8,256], index: 0, kind: input, shape index: {}]
  %s1 = inlined_call_operand.hbm [shape: f32[8,256], index: 1, kind: input, shape index: {}]
  %s2 = inlined_call_operand.hbm [shape: f32[8,256], index: 2, kind: input, shape index: {}]
  %s3 = inlined_call_operand.<no memory space> [shape: f32[1,1], index: 3, kind: input, shape index: {}]
  %s4 = inlined_call_operand.hbm [shape: bf16[64,8,256], index: 4, kind: output, shape index: {0}]
  %s5 = inlined_call_operand.hbm [shape: f32[8,256], index: 5, kind: output, shape index: {1}]
  %s6 = inlined_call_operand.hbm [shape: f32[1,1], index: 6, kind: output, shape index: {2}]
  %7 = xla_tuple %s4, %s5, %s6
  %s8 = sld [smem:[#allocation0]]
  $region81: #{tpu_custom_call.1} parent=0
    _
  %s10 = ssub.s32 1, %s8
  %s11 = scalar_select 0, %s10, %s8
  %v12 = vstv %s3
  %13 = vst [vmem:[#allocation2] sm:$0x1] %v12
  $region1: #{tpu_custom_call.1} parent=0
    #allocation3 [shape = 'u8[131072]{0}', space=vmem, size = 0x20000, scoped, tag = 'input window, operand 0']
    #allocation4 [shape = 's32[2]{0}', space=sflag, size = 0x8, scoped, tag = 'scoped memory for tpu_custom_call.1']
    #allocation5 [shape = 's32[2]{0}', space=sflag, size = 0x8, scoped, tag = 'scoped memory for tpu_custom_call.1']
    #allocation6 [shape = 'u8[8192]{0}', space=vmem, size = 0x2000, scoped, tag = 'input window, operand 1, single buffered']
    #allocation7 [shape = 's32[1]{0}', space=sflag, size = 0x4, scoped, tag = 'scoped memory for tpu_custom_call.1']
    #allocation8 [shape = 'u8[8192]{0}', space=vmem, size = 0x2000, scoped, tag = 'input window, operand 2, single buffered']
    #allocation9 [shape = 'u8[131072]{0}', space=vmem, size = 0x20000, scoped, tag = 'output window, operand 0']
    #allocation10 [shape = 'u8[8192]{0}', space=vmem, size = 0x2000, scoped, tag = 'output window, operand 1, single buffered']
    #allocation11 [shape = 's32[1]{0}', space=sflag, size = 0x4, scoped, tag = 'scoped memory for tpu_custom_call.1']
    #allocation12 [shape = 'u8[512]{0}', space=vmem, size = 0x400, scoped, tag = 'output window, operand 2, single buffered']
    %14 = vsyncpa [#allocation4], 0
    %s15 = scalar_lea.sflag [#allocation4], 1
    %16 = vsyncpa %s15, 0
    %17 = vsyncpa [#allocation7], 0
    %18 = vsyncpa [#allocation5], 0
    %s19 = scalar_lea.sflag [#allocation5], 1
    %20 = vsyncpa %s19, 0
    %21 = vsyncpa [#allocation11], 0
    loop: start=0, step=1, limit=6
    $region2: #{tpu_custom_call.1} parent=1 // loop_pre_header
      _
    $region3: #{tpu_custom_call.1} parent=1 // loop_header
      %s23 = sphi 0, %s27
      %p24 = scmp.ge.s32.totalorder %s23, 6
      %s33 = sphi 0, %s35
      %s36 = sphi 0, %s33
      %s37 = sphi 0, %s36
      %s53 = sphi 0, %s37
      %s57 = sphi 0, %s57
      %s59 = sphi 0, %s57
      %s60 = sphi 0, %s59
      %s74 = sphi 0, %s60
      %s78 = sphi 0, %s78
      %s80 = sphi 0, %s78
      %s81 = sphi 0, %s80
      %s95 = sphi 0, %s81
      %s99 = sphi 0, %s99
      %s101 = sphi 0, %s99
      %s102 = sphi 0, %s101
      %s116 = sphi 0, %s102
      %s122 = sphi 0, %s124
      %s125 = sphi 0, %s122
      %s126 = sphi 0, %s125
      %s142 = sphi 0, %s126
      %s146 = sphi 0, %s146
      %s148 = sphi 0, %s146
      %s149 = sphi 0, %s148
      %s163 = sphi 0, %s149
      %s167 = sphi 0, %s167
      %s169 = sphi 0, %s167
      %s170 = sphi 0, %s169
      %s184 = sphi 0, %s170
    $region4: #{tpu_custom_call.1} parent=1 // loop_header_branch
      %26 = sbr.rel (%p24) target = $region8
    $region5: #{tpu_custom_call.1} parent=1 // loop_body
      %s28 = ssub.s32 %s23, 1
      %s29 = ssub.s32 %s23, 2
      %s30 = sadd.s32 %s23, 1
      %s31 = ssub.s32 %s23, %s30
      %p32 = scmp.eq.s32.totalorder %s31, 0
      %s34 = sadd.s32 %s33, 1
      %s35 = scalar_select %p32, %s33, %s34
      %p38 = pneg %p32
      %p39 = scmp.eq.s32.totalorder %s23, 3
      %p40 = por %p38, %p39
      %p41 = scmp.ne.s32.totalorder %s33, %s36
      %p42 = scmp.eq.s32.totalorder %s23, 0
      %p43 = por %p41, %p42
      %p44 = scmp.ne.s32.totalorder %s33, %s36
      %p45 = scmp.eq.s32.totalorder %s28, 3
      %p46 = por %p44, %p45
      %p47 = scmp.ne.s32.totalorder %s36, %s37
      %p48 = scmp.eq.s32.totalorder %s28, 0
      %p49 = por %p47, %p48
      %p50 = scmp.ne.s32.totalorder %s36, %s37
      %p51 = scmp.eq.s32.totalorder %s29, 3
      %p52 = por %p50, %p51
      %p54 = scmp.ne.s32.totalorder %s37, %s53
      %p55 = scmp.eq.s32.totalorder %s29, 0
      %p56 = por %p54, %p55
      %s58 = sadd.s32 %s57, 1
      %p61 = scmp.eq.s32.totalorder %s23, 3
      %p62 = scmp.ne.s32.totalorder %s57, %s59
      %p63 = scmp.eq.s32.totalorder %s23, 0
      %p64 = por %p62, %p63
      %p65 = scmp.ne.s32.totalorder %s57, %s59
      %p66 = scmp.eq.s32.totalorder %s28, 3
      %p67 = por %p65, %p66
      %p68 = scmp.ne.s32.totalorder %s59, %s60
      %p69 = scmp.eq.s32.totalorder %s28, 0
      %p70 = por %p68, %p69
      %p71 = scmp.ne.s32.totalorder %s59, %s60
      %p72 = scmp.eq.s32.totalorder %s29, 3
      %p73 = por %p71, %p72
      %p75 = scmp.ne.s32.totalorder %s60, %s74
      %p76 = scmp.eq.s32.totalorder %s29, 0
      %p77 = por %p75, %p76
      %s79 = sadd.s32 %s78, 1
      %p82 = scmp.eq.s32.totalorder %s23, 3
      %p83 = scmp.ne.s32.totalorder %s78, %s80
      %p84 = scmp.eq.s32.totalorder %s23, 0
      %p85 = por %p83, %p84
      %p86 = scmp.ne.s32.totalorder %s78, %s80
      %p87 = scmp.eq.s32.totalorder %s28, 3
      %p88 = por %p86, %p87
      %p89 = scmp.ne.s32.totalorder %s80, %s81
      %p90 = scmp.eq.s32.totalorder %s28, 0
      %p91 = por %p89, %p90
      %p92 = scmp.ne.s32.totalorder %s80, %s81
      %p93 = scmp.eq.s32.totalorder %s29, 3
      %p94 = por %p92, %p93
      %p96 = scmp.ne.s32.totalorder %s81, %s95
      %p97 = scmp.eq.s32.totalorder %s29, 0
      %p98 = por %p96, %p97
      %s100 = sadd.s32 %s99, 1
      %p103 = scmp.eq.s32.totalorder %s23, 3
      %p104 = scmp.ne.s32.totalorder %s99, %s101
      %p105 = scmp.eq.s32.totalorder %s23, 0
      %p106 = por %p104, %p105
      %p107 = scmp.ne.s32.totalorder %s99, %s101
      %p108 = scmp.eq.s32.totalorder %s28, 3
      %p109 = por %p107, %p108
      %p110 = scmp.ne.s32.totalorder %s101, %s102
      %p111 = scmp.eq.s32.totalorder %s28, 0
      %p112 = por %p110, %p111
      %p113 = scmp.ne.s32.totalorder %s101, %s102
      %p114 = scmp.eq.s32.totalorder %s29, 3
      %p115 = por %p113, %p114
      %p117 = scmp.ne.s32.totalorder %s102, %s116
      %p118 = scmp.eq.s32.totalorder %s29, 0
      %p119 = por %p117, %p118
      %s120 = ssub.s32 %s23, %s30
      %p121 = scmp.eq.s32.totalorder %s120, 0
      %s123 = sadd.s32 %s122, 1
      %s124 = scalar_select %p121, %s122, %s123
      %p127 = pneg %p121
      %p128 = scmp.eq.s32.totalorder %s23, 3
      %p129 = por %p127, %p128
      %p130 = scmp.ne.s32.totalorder %s122, %s125
      %p131 = scmp.eq.s32.totalorder %s23, 0
      %p132 = por %p130, %p131
      %p133 = scmp.ne.s32.totalorder %s122, %s125
      %p134 = scmp.eq.s32.totalorder %s28, 3
      %p135 = por %p133, %p134
      %p136 = scmp.ne.s32.totalorder %s125, %s126
      %p137 = scmp.eq.s32.totalorder %s28, 0
      %p138 = por %p136, %p137
      %p139 = scmp.ne.s32.totalorder %s125, %s126
      %p140 = scmp.eq.s32.totalorder %s29, 3
      %p141 = por %p139, %p140
      %p143 = scmp.ne.s32.totalorder %s126, %s142
      %p144 = scmp.eq.s32.totalorder %s29, 0
      %p145 = por %p143, %p144
      %s147 = sadd.s32 %s146, 1
      %p150 = scmp.eq.s32.totalorder %s23, 3
      %p151 = scmp.ne.s32.totalorder %s146, %s148
      %p152 = scmp.eq.s32.totalorder %s23, 0
      %p153 = por %p151, %p152
      %p154 = scmp.ne.s32.totalorder %s146, %s148
      %p155 = scmp.eq.s32.totalorder %s28, 3
      %p156 = por %p154, %p155
      %p157 = scmp.ne.s32.totalorder %s148, %s149
      %p158 = scmp.eq.s32.totalorder %s28, 0
      %p159 = por %p157, %p158
      %p160 = scmp.ne.s32.totalorder %s148, %s149
      %p161 = scmp.eq.s32.totalorder %s29, 3
      %p162 = por %p160, %p161
      %p164 = scmp.ne.s32.totalorder %s149, %s163
      %p165 = scmp.eq.s32.totalorder %s29, 0
      %p166 = por %p164, %p165
      %s168 = sadd.s32 %s167, 1
      %p171 = scmp.eq.s32.totalorder %s23, 3
      %p172 = scmp.ne.s32.totalorder %s167, %s169
      %p173 = scmp.eq.s32.totalorder %s23, 0
      %p174 = por %p172, %p173
      %p175 = scmp.ne.s32.totalorder %s167, %s169
      %p176 = scmp.eq.s32.totalorder %s28, 3
      %p177 = por %p175, %p176
      %p178 = scmp.ne.s32.totalorder %s169, %s170
      %p179 = scmp.eq.s32.totalorder %s28, 0
      %p180 = por %p178, %p179
      %p181 = scmp.ne.s32.totalorder %s169, %s170
      %p182 = scmp.eq.s32.totalorder %s29, 3
      %p183 = por %p181, %p182
      %p185 = scmp.ne.s32.totalorder %s170, %s184
      %p186 = scmp.eq.s32.totalorder %s29, 0
      %p187 = por %p185, %p186
      %p188 = scmp.le.s32.totalorder 1, %s23
      %p189 = scmp.lt.s32.totalorder %s23, 5
      %p190 = pnand %p188, %p189
      %p191 = pneg %p190
      // Predicated region
      $region9: #{tpu_custom_call.1} parent=5 // pred_check
        _
      $region10: #{tpu_custom_call.1} parent=5 // pred_check_branch
        %193 = sbr.rel (%p190) target = $region12
      $region11: #{tpu_custom_call.1} parent=5 // pred_region
        %s194 = ssub.s32 %s23, 1
        // Predicated region
        $region13: #{tpu_custom_call.1} parent=11 // pred_check
          %p195 = pneg %p70
        $region14: #{tpu_custom_call.1} parent=11 // pred_check_branch
          %197 = sbr.rel (%p195) target = $region16
        $region15: #{tpu_custom_call.1} parent=11 // pred_region
          %199 = vsyncadd [#allocation7], 0
          %s201 = sshll.u32 %s1, 4
          %s202 = int_to_ptr.hbm [resolvable:$true] %s201
          %s203 = sshll.u32 [#allocation6], 4
          %s204 = int_to_ptr.vmem [resolvable:$true] %s203
          %206 = dma.hbm_to_vmem [thread:$0]  %s202, 256, %s204, [#allocation7]
        $region16: #{tpu_custom_call.1} parent=11 // pred_fallthru
          _
        // Predicated region
        $region17: #{tpu_custom_call.1} parent=11 // pred_check
          %p207 = pneg %p91
        $region18: #{tpu_custom_call.1} parent=11 // pred_check_branch
          %209 = sbr.rel (%p207) target = $region20
        $region19: #{tpu_custom_call.1} parent=11 // pred_region
          %211 = vsyncadd [#allocation7], 0
          %s213 = sshll.u32 %s2, 4
          %s214 = int_to_ptr.hbm [resolvable:$true] %s213
          %s215 = sshll.u32 [#allocation8], 4
          %s216 = int_to_ptr.vmem [resolvable:$true] %s215
          %218 = dma.hbm_to_vmem [thread:$0]  %s214, 256, %s216, [#allocation7]
        $region20: #{tpu_custom_call.1} parent=11 // pred_fallthru
          _
        // Predicated region
        $region21: #{tpu_custom_call.1} parent=11 // pred_check
          %p219 = pneg %p112
        $region22: #{tpu_custom_call.1} parent=11 // pred_check_branch
          %221 = sbr.rel (%p219) target = $region24
        $region23: #{tpu_custom_call.1} parent=11 // pred_region
          _
        $region24: #{tpu_custom_call.1} parent=11 // pred_fallthru
          _
      $region12: #{tpu_custom_call.1} parent=5 // pred_fallthru
        _
      %p222 = scmp.lt.s32.totalorder %s23, 4
      // Predicated region
      $region25: #{tpu_custom_call.1} parent=5 // pred_check
        %p223 = pneg %p222
      $region26: #{tpu_custom_call.1} parent=5 // pred_check_branch
        %225 = sbr.rel (%p223) target = $region28
      $region27: #{tpu_custom_call.1} parent=5 // pred_region
        // Predicated region
        $region29: #{tpu_custom_call.1} parent=27 // pred_check
          %p226 = pneg %p43
        $region30: #{tpu_custom_call.1} parent=27 // pred_check_branch
          %228 = sbr.rel (%p226) target = $region32
        $region31: #{tpu_custom_call.1} parent=27 // pred_region
          %s229 = sand.u32 %s33, 1
          %s230 = scalar_lea.sflag [#allocation4], %s229
          %s231 = sand.u32 %s33, 1
          %s232 = smul.addr %s231, 128
          %s233 = scalar_lea.vmem [#allocation3], %s232
          %s234 = smul.u32 16, %s23
          %236 = vsyncadd %s230, 0
          %s237 = smul.addr %s234, 2
          %s238 = smul.addr %s237, 4
          %s239 = scalar_lea.hbm %s0, %s238
          %s240 = sshll.u32 %s239, 4
          %s241 = int_to_ptr.hbm [resolvable:$true] %s240
          %s242 = sshll.u32 %s233, 4
          %s243 = int_to_ptr.vmem [resolvable:$true] %s242
          %248 = dma.hbm_to_vmem [thread:$0]  %s241, 2048, %s243, %s230, 128, 128, 8
        $region32: #{tpu_custom_call.1} parent=27 // pred_fallthru
          _
      $region28: #{tpu_custom_call.1} parent=5 // pred_fallthru
        _
      %p249 = scmp.le.s32.totalorder 1, %s23
      %p250 = scmp.lt.s32.totalorder %s23, 5
      %p251 = pnand %p249, %p250
      %p252 = pneg %p251
      // Predicated region
      $region33: #{tpu_custom_call.1} parent=5 // pred_check
        _
      $region34: #{tpu_custom_call.1} parent=5 // pred_check_branch
        %254 = sbr.rel (%p251) target = $region36
      $region35: #{tpu_custom_call.1} parent=5 // pred_region
        %s255 = ssub.s32 %s23, 1
        %s256 = sand.u32 %s36, 1
        %s257 = scalar_lea.sflag [#allocation4], %s256
        %s258 = sand.u32 %s36, 1
        %s259 = smul.addr %s258, 128
        %s260 = scalar_lea.vmem [#allocation3], %s259
        // Predicated region
        $region37: #{tpu_custom_call.1} parent=35 // pred_check
          %p261 = pneg %p49
        $region38: #{tpu_custom_call.1} parent=35 // pred_check_branch
          %263 = sbr.rel (%p261) target = $region40
        $region39: #{tpu_custom_call.1} parent=35 // pred_region
          %265 = dma.done %s257, 2048
        $region40: #{tpu_custom_call.1} parent=35 // pred_fallthru
          _
        // Predicated region
        $region41: #{tpu_custom_call.1} parent=35 // pred_check
          %p266 = pneg %p70
        $region42: #{tpu_custom_call.1} parent=35 // pred_check_branch
          %268 = sbr.rel (%p266) target = $region44
        $region43: #{tpu_custom_call.1} parent=35 // pred_region
          %270 = dma.done [#allocation7], 256
        $region44: #{tpu_custom_call.1} parent=35 // pred_fallthru
          _
        // Predicated region
        $region45: #{tpu_custom_call.1} parent=35 // pred_check
          %p271 = pneg %p91
        $region46: #{tpu_custom_call.1} parent=35 // pred_check_branch
          %273 = sbr.rel (%p271) target = $region48
        $region47: #{tpu_custom_call.1} parent=35 // pred_region
          %275 = dma.done [#allocation7], 256
        $region48: #{tpu_custom_call.1} parent=35 // pred_fallthru
          _
        %s276 = sand.u32 %s36, 1
        %s277 = scalar_lea.sflag [#allocation4], %s276
        %s278 = sand.u32 %s36, 1
        %s279 = smul.addr %s278, 128
        %s280 = scalar_lea.vmem [#allocation3], %s279
        %p281 = pneg %p49
        %p282 = pneg %p46
        %p283 = pneg %p70
        %p284 = pneg %p67
        %p285 = pneg %p91
        %p286 = pneg %p88
        %p287 = pneg %p112
        %p288 = pneg %p109
        %p289 = pneg %p138
        %p290 = pneg %p135
        %s291 = sand.u32 %s125, 1
        %s292 = scalar_lea.sflag [#allocation5], %s291
        %s293 = sand.u32 %s125, 1
        %s294 = smul.addr %s293, 128
        %s295 = scalar_lea.vmem [#allocation9], %s294
        %p296 = pneg %p159
        %p297 = pneg %p156
        %p298 = pneg %p180
        %p299 = pneg %p177
        %s300 = smul.u32 16, %s28
        %s301 = smul.u32 16, %s28
        %p302 = scmp.eq.s32.totalorder %s28, 0
        // Predicated region
        $region49: #{tpu_custom_call.1} parent=35 // pred_check
          %p303 = pneg %p302
        $region50: #{tpu_custom_call.1} parent=35 // pred_check_branch
          %305 = sbr.rel (%p303) target = $region52
        $region51: #{tpu_custom_call.1} parent=35 // pred_region
          %v306 = vld [vmem:[#allocation8] sm:$0xff]
          %v307 = vld [vmem:[#allocation8 + $0x8] sm:$0xff]
          %308 = vst [vmem:[#allocation10] sm:$0xff] %v306
          %309 = vst [vmem:[#allocation10 + $0x8] sm:$0xff] %v307
          %v310 = vld [vmem:[#allocation2] sm:$0x1]
          %vm311 = vcmask 0
          %312 = vst.msk [vmem:[#allocation12] sm:$0x1] %vm311, %v310
        $region52: #{tpu_custom_call.1} parent=35 // pred_fallthru
          _
        %v313 = vld [vmem:[#allocation6] sm:$0xff]
        %v314 = vld [vmem:[#allocation6 + $0x8] sm:$0xff]
        %v315 = vld [vmem:[#allocation10] sm:$0xff]
        %v316 = vld [vmem:[#allocation10 + $0x8] sm:$0xff]
        %v317 = vld [vmem:[#allocation12] sm:$0x1]
        %v318 = vld [vmem:[%s260] sm:$0xff]
        %v319 = vunpack.c.l.bf16 %v318
        %v320 = vunpack.c.h.bf16 %v318
        %v321 = vmul.f32 %v315, 0.95
        %v322 = vmul.f32 %v316, 0.95
        %v323 = vmul.f32 %v319, %v313
        %v324 = vmul.f32 %v320, %v314
        %v325 = vadd.f32 %v321, %v323
        %v326 = vadd.f32 %v322, %v324
        %v327 = vmul.f32 %v317, 0.001
        %v329 = vperm.slane %v327, 0
        %330 = vset.pattern.permute.xlu0 0
        %331 = vperm.xlu0 %330, %v329
        %v332 = vpop.permute.xlu0 %331
        %v334 = vsub.f32 %v325, %v332
        %v335 = vsub.f32 %v326, %v332
        %vm336 = vcmp.gt.f32.partialorder %v334, 1.0
        %vm337 = vcmp.gt.f32.partialorder %v335, 1.0
        %v338 = vsel %vm336, 1, 0
        %v339 = vsel %vm337, 1, 0
        %v340 = vcvt.s32.f32 %v338
        %v341 = vcvt.s32.f32 %v339
        %v342 = vrot.slane %v340, 4
        %v343 = vadd.f32 %v340, %v342
        %v344 = vrot.slane %v343, 2
        %v345 = vadd.f32 %v343, %v344
        %v346 = vrot.slane %v345, 1
        %v347 = vadd.f32 %v345, %v346
        %v348 = vrot.slane %v341, 4
        %v349 = vadd.f32 %v341, %v348
        %v350 = vrot.slane %v349, 2
        %v351 = vadd.f32 %v349, %v350
        %v352 = vrot.slane %v351, 1
        %v353 = vadd.f32 %v351, %v352
        %v354 = vadd.f32 %v347, %v353
        %355 = vadd.xlane.f32.xlu0 %v354
        %v356 = vpop.xlane.xlu0 %355
        %v357 = vmul.f32 %v356, 10.0
        %v358 = vadd.f32 %v317, %v357
        %v359 = vmul.f32 %v358, 0.98333335
        %v360 = vsel %vm336, 0.0, %v334
        %v361 = vsel %vm337, 0.0, %v335
        %v362 = vmax.f32 %v360, 0.0
        %v363 = vmax.f32 %v361, 0.0
        %v364 = vpack.c.bf16 %v341, %v340
        %365 = vst [vmem:[%s295] sm:$0xff] %v364
        %s366 = scalar_lea.vmem %s260, 8 [#allocation3]
        %v367 = vld [vmem:[%s366] sm:$0xff]
        %v368 = vunpack.c.l.bf16 %v367
        %v369 = vunpack.c.h.bf16 %v367
        %v370 = vmul.f32 %v362, 0.95
        %v371 = vmul.f32 %v363, 0.95
        %v372 = vmul.f32 %v368, %v313
        %v373 = vmul.f32 %v369, %v314
        %v374 = vadd.f32 %v370, %v372
        %v375 = vadd.f32 %v371, %v373
        %v376 = vmul.f32 %v359, 0.001
        %v378 = vperm.slane %v376, 0
        %379 = vset.pattern.permute.xlu0 0
        %380 = vperm.xlu0 %379, %v378
        %v381 = vpop.permute.xlu0 %380
        %v383 = vsub.f32 %v374, %v381
        %v384 = vsub.f32 %v375, %v381
        %vm385 = vcmp.gt.f32.partialorder %v383, 1.0
        %vm386 = vcmp.gt.f32.partialorder %v384, 1.0
        %v387 = vsel %vm385, 1, 0
        %v388 = vsel %vm386, 1, 0
        %v389 = vcvt.s32.f32 %v387
        %v390 = vcvt.s32.f32 %v388
        %v391 = vrot.slane %v389, 4
        %v392 = vadd.f32 %v389, %v391
        %v393 = vrot.slane %v392, 2
        %v394 = vadd.f32 %v392, %v393
        %v395 = vrot.slane %v394, 1
        %v396 = vadd.f32 %v394, %v395
        %v397 = vrot.slane %v390, 4
        %v398 = vadd.f32 %v390, %v397
        %v399 = vrot.slane %v398, 2
        %v400 = vadd.f32 %v398, %v399
        %v401 = vrot.slane %v400, 1
        %v402 = vadd.f32 %v400, %v401
        %v403 = vadd.f32 %v396, %v402
        %404 = vadd.xlane.f32.xlu0 %v403
        %v405 = vpop.xlane.xlu0 %404
        %v406 = vmul.f32 %v405, 10.0
        %v407 = vadd.f32 %v359, %v406
        %v408 = vmul.f32 %v407, 0.98333335
        %v409 = vsel %vm385, 0.0, %v383
        %v410 = vsel %vm386, 0.0, %v384
        %v411 = vmax.f32 %v409, 0.0
        %v412 = vmax.f32 %v410, 0.0
        %v413 = vpack.c.bf16 %v390, %v389
        %s414 = scalar_lea.vmem %s295, 8 [#allocation9]
        %415 = vst [vmem:[%s414] sm:$0xff] %v413
        %s416 = scalar_lea.vmem %s260, 16 [#allocation3]
        %v417 = vld [vmem:[%s416] sm:$0xff]
        %v418 = vunpack.c.l.bf16 %v417
        %v419 = vunpack.c.h.bf16 %v417
        %v420 = vmul.f32 %v411, 0.95
        %v421 = vmul.f32 %v412, 0.95
        %v422 = vmul.f32 %v418, %v313
        %v423 = vmul.f32 %v419, %v314
        %v424 = vadd.f32 %v420, %v422
        %v425 = vadd.f32 %v421, %v423
        %v426 = vmul.f32 %v408, 0.001
        %v428 = vperm.slane %v426, 0
        %429 = vset.pattern.permute.xlu0 0
        %430 = vperm.xlu0 %429, %v428
        %v431 = vpop.permute.xlu0 %430
        %v433 = vsub.f32 %v424, %v431
        %v434 = vsub.f32 %v425, %v431
        %vm435 = vcmp.gt.f32.partialorder %v433, 1.0
        %vm436 = vcmp.gt.f32.partialorder %v434, 1.0
        %v437 = vsel %vm435, 1, 0
        %v438 = vsel %vm436, 1, 0
        %v439 = vcvt.s32.f32 %v437
        %v440 = vcvt.s32.f32 %v438
        %v441 = vrot.slane %v439, 4
        %v442 = vadd.f32 %v439, %v441
        %v443 = vrot.slane %v442, 2
        %v444 = vadd.f32 %v442, %v443
        %v445 = vrot.slane %v444, 1
        %v446 = vadd.f32 %v444, %v445
        %v447 = vrot.slane %v440, 4
        %v448 = vadd.f32 %v440, %v447
        %v449 = vrot.slane %v448, 2
        %v450 = vadd.f32 %v448, %v449
        %v451 = vrot.slane %v450, 1
        %v452 = vadd.f32 %v450, %v451
        %v453 = vadd.f32 %v446, %v452
        %454 = vadd.xlane.f32.xlu0 %v453
        %v455 = vpop.xlane.xlu0 %454
        %v456 = vmul.f32 %v455, 10.0
        %v457 = vadd.f32 %v408, %v456
        %v458 = vmul.f32 %v457, 0.98333335
        %v459 = vsel %vm435, 0.0, %v433
        %v460 = vsel %vm436, 0.0, %v434
        %v461 = vmax.f32 %v459, 0.0
        %v462 = vmax.f32 %v460, 0.0
        %v463 = vpack.c.bf16 %v440, %v439
        %s464 = scalar_lea.vmem %s295, 16 [#allocation9]
        %465 = vst [vmem:[%s464] sm:$0xff] %v463
        %s466 = scalar_lea.vmem %s260, 24 [#allocation3]
        %v467 = vld [vmem:[%s466] sm:$0xff]
        %v468 = vunpack.c.l.bf16 %v467
        %v469 = vunpack.c.h.bf16 %v467
        %v470 = vmul.f32 %v461, 0.95
        %v471 = vmul.f32 %v462, 0.95
        %v472 = vmul.f32 %v468, %v313
        %v473 = vmul.f32 %v469, %v314
        %v474 = vadd.f32 %v470, %v472
        %v475 = vadd.f32 %v471, %v473
        %v476 = vmul.f32 %v458, 0.001
        %v478 = vperm.slane %v476, 0
        %479 = vset.pattern.permute.xlu0 0
        %480 = vperm.xlu0 %479, %v478
        %v481 = vpop.permute.xlu0 %480
        %v483 = vsub.f32 %v474, %v481
        %v484 = vsub.f32 %v475, %v481
        %vm485 = vcmp.gt.f32.partialorder %v483, 1.0
        %vm486 = vcmp.gt.f32.partialorder %v484, 1.0
        %v487 = vsel %vm485, 1, 0
        %v488 = vsel %vm486, 1, 0
        %v489 = vcvt.s32.f32 %v487
        %v490 = vcvt.s32.f32 %v488
        %v491 = vrot.slane %v489, 4
        %v492 = vadd.f32 %v489, %v491
        %v493 = vrot.slane %v492, 2
        %v494 = vadd.f32 %v492, %v493
        %v495 = vrot.slane %v494, 1
        %v496 = vadd.f32 %v494, %v495
        %v497 = vrot.slane %v490, 4
        %v498 = vadd.f32 %v490, %v497
        %v499 = vrot.slane %v498, 2
        %v500 = vadd.f32 %v498, %v499
        %v501 = vrot.slane %v500, 1
        %v502 = vadd.f32 %v500, %v501
        %v503 = vadd.f32 %v496, %v502
        %504 = vadd.xlane.f32.xlu0 %v503
        %v505 = vpop.xlane.xlu0 %504
        %v506 = vmul.f32 %v505, 10.0
        %v507 = vadd.f32 %v458, %v506
        %v508 = vmul.f32 %v507, 0.98333335
        %v509 = vsel %vm485, 0.0, %v483
        %v510 = vsel %vm486, 0.0, %v484
        %v511 = vmax.f32 %v509, 0.0
        %v512 = vmax.f32 %v510, 0.0
        %v513 = vpack.c.bf16 %v490, %v489
        %s514 = scalar_lea.vmem %s295, 24 [#allocation9]
        %515 = vst [vmem:[%s514] sm:$0xff] %v513
        %s516 = scalar_lea.vmem %s260, 32 [#allocation3]
        %v517 = vld [vmem:[%s516] sm:$0xff]
        %v518 = vunpack.c.l.bf16 %v517
        %v519 = vunpack.c.h.bf16 %v517
        %v520 = vmul.f32 %v511, 0.95
        %v521 = vmul.f32 %v512, 0.95
        %v522 = vmul.f32 %v518, %v313
        %v523 = vmul.f32 %v519, %v314
        %v524 = vadd.f32 %v520, %v522
        %v525 = vadd.f32 %v521, %v523
        %v526 = vmul.f32 %v508, 0.001
        %v528 = vperm.slane %v526, 0
        %529 = vset.pattern.permute.xlu0 0
        %530 = vperm.xlu0 %529, %v528
        %v531 = vpop.permute.xlu0 %530
        %v533 = vsub.f32 %v524, %v531
        %v534 = vsub.f32 %v525, %v531
        %vm535 = vcmp.gt.f32.partialorder %v533, 1.0
        %vm536 = vcmp.gt.f32.partialorder %v534, 1.0
        %v537 = vsel %vm535, 1, 0
        %v538 = vsel %vm536, 1, 0
        %v539 = vcvt.s32.f32 %v537
        %v540 = vcvt.s32.f32 %v538
        %v541 = vrot.slane %v539, 4
        %v542 = vadd.f32 %v539, %v541
        %v543 = vrot.slane %v542, 2
        %v544 = vadd.f32 %v542, %v543
        %v545 = vrot.slane %v544, 1
        %v546 = vadd.f32 %v544, %v545
        %v547 = vrot.slane %v540, 4
        %v548 = vadd.f32 %v540, %v547
        %v549 = vrot.slane %v548, 2
        %v550 = vadd.f32 %v548, %v549
        %v551 = vrot.slane %v550, 1
        %v552 = vadd.f32 %v550, %v551
        %v553 = vadd.f32 %v546, %v552
        %554 = vadd.xlane.f32.xlu0 %v553
        %v555 = vpop.xlane.xlu0 %554
        %v556 = vmul.f32 %v555, 10.0
        %v557 = vadd.f32 %v508, %v556
        %v558 = vmul.f32 %v557, 0.98333335
        %v559 = vsel %vm535, 0.0, %v533
        %v560 = vsel %vm536, 0.0, %v534
        %v561 = vmax.f32 %v559, 0.0
        %v562 = vmax.f32 %v560, 0.0
        %v563 = vpack.c.bf16 %v540, %v539
        %s564 = scalar_lea.vmem %s295, 32 [#allocation9]
        %565 = vst [vmem:[%s564] sm:$0xff] %v563
        %s566 = scalar_lea.vmem %s260, 40 [#allocation3]
        %v567 = vld [vmem:[%s566] sm:$0xff]
        %v568 = vunpack.c.l.bf16 %v567
        %v569 = vunpack.c.h.bf16 %v567
        %v570 = vmul.f32 %v561, 0.95
        %v571 = vmul.f32 %v562, 0.95
        %v572 = vmul.f32 %v568, %v313
        %v573 = vmul.f32 %v569, %v314
        %v574 = vadd.f32 %v570, %v572
        %v575 = vadd.f32 %v571, %v573
        %v576 = vmul.f32 %v558, 0.001
        %v578 = vperm.slane %v576, 0
        %579 = vset.pattern.permute.xlu0 0
        %580 = vperm.xlu0 %579, %v578
        %v581 = vpop.permute.xlu0 %580
        %v583 = vsub.f32 %v574, %v581
        %v584 = vsub.f32 %v575, %v581
        %vm585 = vcmp.gt.f32.partialorder %v583, 1.0
        %vm586 = vcmp.gt.f32.partialorder %v584, 1.0
        %v587 = vsel %vm585, 1, 0
        %v588 = vsel %vm586, 1, 0
        %v589 = vcvt.s32.f32 %v587
        %v590 = vcvt.s32.f32 %v588
        %v591 = vrot.slane %v589, 4
        %v592 = vadd.f32 %v589, %v591
        %v593 = vrot.slane %v592, 2
        %v594 = vadd.f32 %v592, %v593
        %v595 = vrot.slane %v594, 1
        %v596 = vadd.f32 %v594, %v595
        %v597 = vrot.slane %v590, 4
        %v598 = vadd.f32 %v590, %v597
        %v599 = vrot.slane %v598, 2
        %v600 = vadd.f32 %v598, %v599
        %v601 = vrot.slane %v600, 1
        %v602 = vadd.f32 %v600, %v601
        %v603 = vadd.f32 %v596, %v602
        %604 = vadd.xlane.f32.xlu0 %v603
        %v605 = vpop.xlane.xlu0 %604
        %v606 = vmul.f32 %v605, 10.0
        %v607 = vadd.f32 %v558, %v606
        %v608 = vmul.f32 %v607, 0.98333335
        %v609 = vsel %vm585, 0.0, %v583
        %v610 = vsel %vm586, 0.0, %v584
        %v611 = vmax.f32 %v609, 0.0
        %v612 = vmax.f32 %v610, 0.0
        %v613 = vpack.c.bf16 %v590, %v589
        %s614 = scalar_lea.vmem %s295, 40 [#allocation9]
        %615 = vst [vmem:[%s614] sm:$0xff] %v613
        %s616 = scalar_lea.vmem %s260, 48 [#allocation3]
        %v617 = vld [vmem:[%s616] sm:$0xff]
        %v618 = vunpack.c.l.bf16 %v617
        %v619 = vunpack.c.h.bf16 %v617
        %v620 = vmul.f32 %v611, 0.95
        %v621 = vmul.f32 %v612, 0.95
        %v622 = vmul.f32 %v618, %v313
        %v623 = vmul.f32 %v619, %v314
        %v624 = vadd.f32 %v620, %v622
        %v625 = vadd.f32 %v621, %v623
        %v626 = vmul.f32 %v608, 0.001
        %v628 = vperm.slane %v626, 0
        %629 = vset.pattern.permute.xlu0 0
        %630 = vperm.xlu0 %629, %v628
        %v631 = vpop.permute.xlu0 %630
        %v633 = vsub.f32 %v624, %v631
        %v634 = vsub.f32 %v625, %v631
        %vm635 = vcmp.gt.f32.partialorder %v633, 1.0
        %vm636 = vcmp.gt.f32.partialorder %v634, 1.0
        %v637 = vsel %vm635, 1, 0
        %v638 = vsel %vm636, 1, 0
        %v639 = vcvt.s32.f32 %v637
        %v640 = vcvt.s32.f32 %v638
        %v641 = vrot.slane %v639, 4
        %v642 = vadd.f32 %v639, %v641
        %v643 = vrot.slane %v642, 2
        %v644 = vadd.f32 %v642, %v643
        %v645 = vrot.slane %v644, 1
        %v646 = vadd.f32 %v644, %v645
        %v647 = vrot.slane %v640, 4
        %v648 = vadd.f32 %v640, %v647
        %v649 = vrot.slane %v648, 2
        %v650 = vadd.f32 %v648, %v649
        %v651 = vrot.slane %v650, 1
        %v652 = vadd.f32 %v650, %v651
        %v653 = vadd.f32 %v646, %v652
        %654 = vadd.xlane.f32.xlu0 %v653
        %v655 = vpop.xlane.xlu0 %654
        %v656 = vmul.f32 %v655, 10.0
        %v657 = vadd.f32 %v608, %v656
        %v658 = vmul.f32 %v657, 0.98333335
        %v659 = vsel %vm635, 0.0, %v633
        %v660 = vsel %vm636, 0.0, %v634
        %v661 = vmax.f32 %v659, 0.0
        %v662 = vmax.f32 %v660, 0.0
        %v663 = vpack.c.bf16 %v640, %v639
        %s664 = scalar_lea.vmem %s295, 48 [#allocation9]
        %665 = vst [vmem:[%s664] sm:$0xff] %v663
        %s666 = scalar_lea.vmem %s260, 56 [#allocation3]
        %v667 = vld [vmem:[%s666] sm:$0xff]
        %v668 = vunpack.c.l.bf16 %v667
        %v669 = vunpack.c.h.bf16 %v667
        %v670 = vmul.f32 %v661, 0.95
        %v671 = vmul.f32 %v662, 0.95
        %v672 = vmul.f32 %v668, %v313
        %v673 = vmul.f32 %v669, %v314
        %v674 = vadd.f32 %v670, %v672
        %v675 = vadd.f32 %v671, %v673
        %v676 = vmul.f32 %v658, 0.001
        %v678 = vperm.slane %v676, 0
        %679 = vset.pattern.permute.xlu0 0
        %680 = vperm.xlu0 %679, %v678
        %v681 = vpop.permute.xlu0 %680
        %v683 = vsub.f32 %v674, %v681
        %v684 = vsub.f32 %v675, %v681
        %vm685 = vcmp.gt.f32.partialorder %v683, 1.0
        %vm686 = vcmp.gt.f32.partialorder %v684, 1.0
        %v687 = vsel %vm685, 1, 0
        %v688 = vsel %vm686, 1, 0
        %v689 = vcvt.s32.f32 %v687
        %v690 = vcvt.s32.f32 %v688
        %v691 = vrot.slane %v689, 4
        %v692 = vadd.f32 %v689, %v691
        %v693 = vrot.slane %v692, 2
        %v694 = vadd.f32 %v692, %v693
        %v695 = vrot.slane %v694, 1
        %v696 = vadd.f32 %v694, %v695
        %v697 = vrot.slane %v690, 4
        %v698 = vadd.f32 %v690, %v697
        %v699 = vrot.slane %v698, 2
        %v700 = vadd.f32 %v698, %v699
        %v701 = vrot.slane %v700, 1
        %v702 = vadd.f32 %v700, %v701
        %v703 = vadd.f32 %v696, %v702
        %704 = vadd.xlane.f32.xlu0 %v703
        %v705 = vpop.xlane.xlu0 %704
        %v706 = vmul.f32 %v705, 10.0
        %v707 = vadd.f32 %v658, %v706
        %v708 = vmul.f32 %v707, 0.98333335
        %v709 = vsel %vm685, 0.0, %v683
        %v710 = vsel %vm686, 0.0, %v684
        %v711 = vmax.f32 %v709, 0.0
        %v712 = vmax.f32 %v710, 0.0
        %v713 = vpack.c.bf16 %v690, %v689
        %s714 = scalar_lea.vmem %s295, 56 [#allocation9]
        %715 = vst [vmem:[%s714] sm:$0xff] %v713
        %s716 = scalar_lea.vmem %s260, 64 [#allocation3]
        %v717 = vld [vmem:[%s716] sm:$0xff]
        %v718 = vunpack.c.l.bf16 %v717
        %v719 = vunpack.c.h.bf16 %v717
        %v720 = vmul.f32 %v711, 0.95
        %v721 = vmul.f32 %v712, 0.95
        %v722 = vmul.f32 %v718, %v313
        %v723 = vmul.f32 %v719, %v314
        %v724 = vadd.f32 %v720, %v722
        %v725 = vadd.f32 %v721, %v723
        %v726 = vmul.f32 %v708, 0.001
        %v728 = vperm.slane %v726, 0
        %729 = vset.pattern.permute.xlu0 0
        %730 = vperm.xlu0 %729, %v728
        %v731 = vpop.permute.xlu0 %730
        %v733 = vsub.f32 %v724, %v731
        %v734 = vsub.f32 %v725, %v731
        %vm735 = vcmp.gt.f32.partialorder %v733, 1.0
        %vm736 = vcmp.gt.f32.partialorder %v734, 1.0
        %v737 = vsel %vm735, 1, 0
        %v738 = vsel %vm736, 1, 0
        %v739 = vcvt.s32.f32 %v737
        %v740 = vcvt.s32.f32 %v738
        %v741 = vrot.slane %v739, 4
        %v742 = vadd.f32 %v739, %v741
        %v743 = vrot.slane %v742, 2
        %v744 = vadd.f32 %v742, %v743
        %v745 = vrot.slane %v744, 1
        %v746 = vadd.f32 %v744, %v745
        %v747 = vrot.slane %v740, 4
        %v748 = vadd.f32 %v740, %v747
        %v749 = vrot.slane %v748, 2
        %v750 = vadd.f32 %v748, %v749
        %v751 = vrot.slane %v750, 1
        %v752 = vadd.f32 %v750, %v751
        %v753 = vadd.f32 %v746, %v752
        %754 = vadd.xlane.f32.xlu0 %v753
        %v755 = vpop.xlane.xlu0 %754
        %v756 = vmul.f32 %v755, 10.0
        %v757 = vadd.f32 %v708, %v756
        %v758 = vmul.f32 %v757, 0.98333335
        %v759 = vsel %vm735, 0.0, %v733
        %v760 = vsel %vm736, 0.0, %v734
        %v761 = vmax.f32 %v759, 0.0
        %v762 = vmax.f32 %v760, 0.0
        %v763 = vpack.c.bf16 %v740, %v739
        %s764 = scalar_lea.vmem %s295, 64 [#allocation9]
        %765 = vst [vmem:[%s764] sm:$0xff] %v763
        %s766 = scalar_lea.vmem %s260, 72 [#allocation3]
        %v767 = vld [vmem:[%s766] sm:$0xff]
        %v768 = vunpack.c.l.bf16 %v767
        %v769 = vunpack.c.h.bf16 %v767
        %v770 = vmul.f32 %v761, 0.95
        %v771 = vmul.f32 %v762, 0.95
        %v772 = vmul.f32 %v768, %v313
        %v773 = vmul.f32 %v769, %v314
        %v774 = vadd.f32 %v770, %v772
        %v775 = vadd.f32 %v771, %v773
        %v776 = vmul.f32 %v758, 0.001
        %v778 = vperm.slane %v776, 0
        %779 = vset.pattern.permute.xlu0 0
        %780 = vperm.xlu0 %779, %v778
        %v781 = vpop.permute.xlu0 %780
        %v783 = vsub.f32 %v774, %v781
        %v784 = vsub.f32 %v775, %v781
        %vm785 = vcmp.gt.f32.partialorder %v783, 1.0
        %vm786 = vcmp.gt.f32.partialorder %v784, 1.0
        %v787 = vsel %vm785, 1, 0
        %v788 = vsel %vm786, 1, 0
        %v789 = vcvt.s32.f32 %v787
        %v790 = vcvt.s32.f32 %v788
        %v791 = vrot.slane %v789, 4
        %v792 = vadd.f32 %v789, %v791
        %v793 = vrot.slane %v792, 2
        %v794 = vadd.f32 %v792, %v793
        %v795 = vrot.slane %v794, 1
        %v796 = vadd.f32 %v794, %v795
        %v797 = vrot.slane %v790, 4
        %v798 = vadd.f32 %v790, %v797
        %v799 = vrot.slane %v798, 2
        %v800 = vadd.f32 %v798, %v799
        %v801 = vrot.slane %v800, 1
        %v802 = vadd.f32 %v800, %v801
        %v803 = vadd.f32 %v796, %v802
        %804 = vadd.xlane.f32.xlu0 %v803
        %v805 = vpop.xlane.xlu0 %804
        %v806 = vmul.f32 %v805, 10.0
        %v807 = vadd.f32 %v758, %v806
        %v808 = vmul.f32 %v807, 0.98333335
        %v809 = vsel %vm785, 0.0, %v783
        %v810 = vsel %vm786, 0.0, %v784
        %v811 = vmax.f32 %v809, 0.0
        %v812 = vmax.f32 %v810, 0.0
        %v813 = vpack.c.bf16 %v790, %v789
        %s814 = scalar_lea.vmem %s295, 72 [#allocation9]
        %815 = vst [vmem:[%s814] sm:$0xff] %v813
        %s816 = scalar_lea.vmem %s260, 80 [#allocation3]
        %v817 = vld [vmem:[%s816] sm:$0xff]
        %v818 = vunpack.c.l.bf16 %v817
        %v819 = vunpack.c.h.bf16 %v817
        %v820 = vmul.f32 %v811, 0.95
        %v821 = vmul.f32 %v812, 0.95
        %v822 = vmul.f32 %v818, %v313
        %v823 = vmul.f32 %v819, %v314
        %v824 = vadd.f32 %v820, %v822
        %v825 = vadd.f32 %v821, %v823
        %v826 = vmul.f32 %v808, 0.001
        %v828 = vperm.slane %v826, 0
        %829 = vset.pattern.permute.xlu0 0
        %830 = vperm.xlu0 %829, %v828
        %v831 = vpop.permute.xlu0 %830
        %v833 = vsub.f32 %v824, %v831
        %v834 = vsub.f32 %v825, %v831
        %vm835 = vcmp.gt.f32.partialorder %v833, 1.0
        %vm836 = vcmp.gt.f32.partialorder %v834, 1.0
        %v837 = vsel %vm835, 1, 0
        %v838 = vsel %vm836, 1, 0
        %v839 = vcvt.s32.f32 %v837
        %v840 = vcvt.s32.f32 %v838
        %v841 = vrot.slane %v839, 4
        %v842 = vadd.f32 %v839, %v841
        %v843 = vrot.slane %v842, 2
        %v844 = vadd.f32 %v842, %v843
        %v845 = vrot.slane %v844, 1
        %v846 = vadd.f32 %v844, %v845
        %v847 = vrot.slane %v840, 4
        %v848 = vadd.f32 %v840, %v847
        %v849 = vrot.slane %v848, 2
        %v850 = vadd.f32 %v848, %v849
        %v851 = vrot.slane %v850, 1
        %v852 = vadd.f32 %v850, %v851
        %v853 = vadd.f32 %v846, %v852
        %854 = vadd.xlane.f32.xlu0 %v853
        %v855 = vpop.xlane.xlu0 %854
        %v856 = vmul.f32 %v855, 10.0
        %v857 = vadd.f32 %v808, %v856
        %v858 = vmul.f32 %v857, 0.98333335
        %v859 = vsel %vm835, 0.0, %v833
        %v860 = vsel %vm836, 0.0, %v834
        %v861 = vmax.f32 %v859, 0.0
        %v862 = vmax.f32 %v860, 0.0
        %v863 = vpack.c.bf16 %v840, %v839
        %s864 = scalar_lea.vmem %s295, 80 [#allocation9]
        %865 = vst [vmem:[%s864] sm:$0xff] %v863
        %s866 = scalar_lea.vmem %s260, 88 [#allocation3]
        %v867 = vld [vmem:[%s866] sm:$0xff]
        %v868 = vunpack.c.l.bf16 %v867
        %v869 = vunpack.c.h.bf16 %v867
        %v870 = vmul.f32 %v861, 0.95
        %v871 = vmul.f32 %v862, 0.95
        %v872 = vmul.f32 %v868, %v313
        %v873 = vmul.f32 %v869, %v314
        %v874 = vadd.f32 %v870, %v872
        %v875 = vadd.f32 %v871, %v873
        %v876 = vmul.f32 %v858, 0.001
        %v878 = vperm.slane %v876, 0
        %879 = vset.pattern.permute.xlu0 0
        %880 = vperm.xlu0 %879, %v878
        %v881 = vpop.permute.xlu0 %880
        %v883 = vsub.f32 %v874, %v881
        %v884 = vsub.f32 %v875, %v881
        %vm885 = vcmp.gt.f32.partialorder %v883, 1.0
        %vm886 = vcmp.gt.f32.partialorder %v884, 1.0
        %v887 = vsel %vm885, 1, 0
        %v888 = vsel %vm886, 1, 0
        %v889 = vcvt.s32.f32 %v887
        %v890 = vcvt.s32.f32 %v888
        %v891 = vrot.slane %v889, 4
        %v892 = vadd.f32 %v889, %v891
        %v893 = vrot.slane %v892, 2
        %v894 = vadd.f32 %v892, %v893
        %v895 = vrot.slane %v894, 1
        %v896 = vadd.f32 %v894, %v895
        %v897 = vrot.slane %v890, 4
        %v898 = vadd.f32 %v890, %v897
        %v899 = vrot.slane %v898, 2
        %v900 = vadd.f32 %v898, %v899
        %v901 = vrot.slane %v900, 1
        %v902 = vadd.f32 %v900, %v901
        %v903 = vadd.f32 %v896, %v902
        %904 = vadd.xlane.f32.xlu0 %v903
        %v905 = vpop.xlane.xlu0 %904
        %v906 = vmul.f32 %v905, 10.0
        %v907 = vadd.f32 %v858, %v906
        %v908 = vmul.f32 %v907, 0.98333335
        %v909 = vsel %vm885, 0.0, %v883
        %v910 = vsel %vm886, 0.0, %v884
        %v911 = vmax.f32 %v909, 0.0
        %v912 = vmax.f32 %v910, 0.0
        %v913 = vpack.c.bf16 %v890, %v889
        %s914 = scalar_lea.vmem %s295, 88 [#allocation9]
        %915 = vst [vmem:[%s914] sm:$0xff] %v913
        %s916 = scalar_lea.vmem %s260, 96 [#allocation3]
        %v917 = vld [vmem:[%s916] sm:$0xff]
        %v918 = vunpack.c.l.bf16 %v917
        %v919 = vunpack.c.h.bf16 %v917
        %v920 = vmul.f32 %v911, 0.95
        %v921 = vmul.f32 %v912, 0.95
        %v922 = vmul.f32 %v918, %v313
        %v923 = vmul.f32 %v919, %v314
        %v924 = vadd.f32 %v920, %v922
        %v925 = vadd.f32 %v921, %v923
        %v926 = vmul.f32 %v908, 0.001
        %v928 = vperm.slane %v926, 0
        %929 = vset.pattern.permute.xlu0 0
        %930 = vperm.xlu0 %929, %v928
        %v931 = vpop.permute.xlu0 %930
        %v933 = vsub.f32 %v924, %v931
        %v934 = vsub.f32 %v925, %v931
        %vm935 = vcmp.gt.f32.partialorder %v933, 1.0
        %vm936 = vcmp.gt.f32.partialorder %v934, 1.0
        %v937 = vsel %vm935, 1, 0
        %v938 = vsel %vm936, 1, 0
        %v939 = vcvt.s32.f32 %v937
        %v940 = vcvt.s32.f32 %v938
        %v941 = vrot.slane %v939, 4
        %v942 = vadd.f32 %v939, %v941
        %v943 = vrot.slane %v942, 2
        %v944 = vadd.f32 %v942, %v943
        %v945 = vrot.slane %v944, 1
        %v946 = vadd.f32 %v944, %v945
        %v947 = vrot.slane %v940, 4
        %v948 = vadd.f32 %v940, %v947
        %v949 = vrot.slane %v948, 2
        %v950 = vadd.f32 %v948, %v949
        %v951 = vrot.slane %v950, 1
        %v952 = vadd.f32 %v950, %v951
        %v953 = vadd.f32 %v946, %v952
        %954 = vadd.xlane.f32.xlu0 %v953
        %v955 = vpop.xlane.xlu0 %954
        %v956 = vmul.f32 %v955, 10.0
        %v957 = vadd.f32 %v908, %v956
        %v958 = vmul.f32 %v957, 0.98333335
        %v959 = vsel %vm935, 0.0, %v933
        %v960 = vsel %vm936, 0.0, %v934
        %v961 = vmax.f32 %v959, 0.0
        %v962 = vmax.f32 %v960, 0.0
        %v963 = vpack.c.bf16 %v940, %v939
        %s964 = scalar_lea.vmem %s295, 96 [#allocation9]
        %965 = vst [vmem:[%s964] sm:$0xff] %v963
        %s966 = scalar_lea.vmem %s260, 104 [#allocation3]
        %v967 = vld [vmem:[%s966] sm:$0xff]
        %v968 = vunpack.c.l.bf16 %v967
        %v969 = vunpack.c.h.bf16 %v967
        %v970 = vmul.f32 %v961, 0.95
        %v971 = vmul.f32 %v962, 0.95
        %v972 = vmul.f32 %v968, %v313
        %v973 = vmul.f32 %v969, %v314
        %v974 = vadd.f32 %v970, %v972
        %v975 = vadd.f32 %v971, %v973
        %v976 = vmul.f32 %v958, 0.001
        %v978 = vperm.slane %v976, 0
        %979 = vset.pattern.permute.xlu0 0
        %980 = vperm.xlu0 %979, %v978
        %v981 = vpop.permute.xlu0 %980
        %v983 = vsub.f32 %v974, %v981
        %v984 = vsub.f32 %v975, %v981
        %vm985 = vcmp.gt.f32.partialorder %v983, 1.0
        %vm986 = vcmp.gt.f32.partialorder %v984, 1.0
        %v987 = vsel %vm985, 1, 0
        %v988 = vsel %vm986, 1, 0
        %v989 = vcvt.s32.f32 %v987
        %v990 = vcvt.s32.f32 %v988
        %v991 = vrot.slane %v989, 4
        %v992 = vadd.f32 %v989, %v991
        %v993 = vrot.slane %v992, 2
        %v994 = vadd.f32 %v992, %v993
        %v995 = vrot.slane %v994, 1
        %v996 = vadd.f32 %v994, %v995
        %v997 = vrot.slane %v990, 4
        %v998 = vadd.f32 %v990, %v997
        %v999 = vrot.slane %v998, 2
        %v1000 = vadd.f32 %v998, %v999
        %v1001 = vrot.slane %v1000, 1
        %v1002 = vadd.f32 %v1000, %v1001
        %v1003 = vadd.f32 %v996, %v1002
        %1004 = vadd.xlane.f32.xlu0 %v1003
        %v1005 = vpop.xlane.xlu0 %1004
        %v1006 = vmul.f32 %v1005, 10.0
        %v1007 = vadd.f32 %v958, %v1006
        %v1008 = vmul.f32 %v1007, 0.98333335
        %v1009 = vsel %vm985, 0.0, %v983
        %v1010 = vsel %vm986, 0.0, %v984
        %v1011 = vmax.f32 %v1009, 0.0
        %v1012 = vmax.f32 %v1010, 0.0
        %v1013 = vpack.c.bf16 %v990, %v989
        %s1014 = scalar_lea.vmem %s295, 104 [#allocation9]
        %1015 = vst [vmem:[%s1014] sm:$0xff] %v1013
        %s1016 = scalar_lea.vmem %s260, 112 [#allocation3]
        %v1017 = vld [vmem:[%s1016] sm:$0xff]
        %v1018 = vunpack.c.l.bf16 %v1017
        %v1019 = vunpack.c.h.bf16 %v1017
        %v1020 = vmul.f32 %v1011, 0.95
        %v1021 = vmul.f32 %v1012, 0.95
        %v1022 = vmul.f32 %v1018, %v313
        %v1023 = vmul.f32 %v1019, %v314
        %v1024 = vadd.f32 %v1020, %v1022
        %v1025 = vadd.f32 %v1021, %v1023
        %v1026 = vmul.f32 %v1008, 0.001
        %v1028 = vperm.slane %v1026, 0
        %1029 = vset.pattern.permute.xlu0 0
        %1030 = vperm.xlu0 %1029, %v1028
        %v1031 = vpop.permute.xlu0 %1030
        %v1033 = vsub.f32 %v1024, %v1031
        %v1034 = vsub.f32 %v1025, %v1031
        %vm1035 = vcmp.gt.f32.partialorder %v1033, 1.0
        %vm1036 = vcmp.gt.f32.partialorder %v1034, 1.0
        %v1037 = vsel %vm1035, 1, 0
        %v1038 = vsel %vm1036, 1, 0
        %v1039 = vcvt.s32.f32 %v1037
        %v1040 = vcvt.s32.f32 %v1038
        %v1041 = vrot.slane %v1039, 4
        %v1042 = vadd.f32 %v1039, %v1041
        %v1043 = vrot.slane %v1042, 2
        %v1044 = vadd.f32 %v1042, %v1043
        %v1045 = vrot.slane %v1044, 1
        %v1046 = vadd.f32 %v1044, %v1045
        %v1047 = vrot.slane %v1040, 4
        %v1048 = vadd.f32 %v1040, %v1047
        %v1049 = vrot.slane %v1048, 2
        %v1050 = vadd.f32 %v1048, %v1049
        %v1051 = vrot.slane %v1050, 1
        %v1052 = vadd.f32 %v1050, %v1051
        %v1053 = vadd.f32 %v1046, %v1052
        %1054 = vadd.xlane.f32.xlu0 %v1053
        %v1055 = vpop.xlane.xlu0 %1054
        %v1056 = vmul.f32 %v1055, 10.0
        %v1057 = vadd.f32 %v1008, %v1056
        %v1058 = vmul.f32 %v1057, 0.98333335
        %v1059 = vsel %vm1035, 0.0, %v1033
        %v1060 = vsel %vm1036, 0.0, %v1034
        %v1061 = vmax.f32 %v1059, 0.0
        %v1062 = vmax.f32 %v1060, 0.0
        %v1063 = vpack.c.bf16 %v1040, %v1039
        %s1064 = scalar_lea.vmem %s295, 112 [#allocation9]
        %1065 = vst [vmem:[%s1064] sm:$0xff] %v1063
        %s1066 = scalar_lea.vmem %s260, 120 [#allocation3]
        %v1067 = vld [vmem:[%s1066] sm:$0xff]
        %v1068 = vunpack.c.l.bf16 %v1067
        %v1069 = vunpack.c.h.bf16 %v1067
        %v1070 = vmul.f32 %v1061, 0.95
        %v1071 = vmul.f32 %v1062, 0.95
        %v1072 = vmul.f32 %v1068, %v313
        %v1073 = vmul.f32 %v1069, %v314
        %v1074 = vadd.f32 %v1070, %v1072
        %v1075 = vadd.f32 %v1071, %v1073
        %v1076 = vmul.f32 %v1058, 0.001
        %v1078 = vperm.slane %v1076, 0
        %1079 = vset.pattern.permute.xlu0 0
        %1080 = vperm.xlu0 %1079, %v1078
        %v1081 = vpop.permute.xlu0 %1080
        %v1083 = vsub.f32 %v1074, %v1081
        %v1084 = vsub.f32 %v1075, %v1081
        %vm1085 = vcmp.gt.f32.partialorder %v1083, 1.0
        %vm1086 = vcmp.gt.f32.partialorder %v1084, 1.0
        %v1087 = vsel %vm1085, 1, 0
        %v1088 = vsel %vm1086, 1, 0
        %v1089 = vcvt.s32.f32 %v1087
        %v1090 = vcvt.s32.f32 %v1088
        %v1091 = vrot.slane %v1089, 4
        %v1092 = vadd.f32 %v1089, %v1091
        %v1093 = vrot.slane %v1092, 2
        %v1094 = vadd.f32 %v1092, %v1093
        %v1095 = vrot.slane %v1094, 1
        %v1096 = vadd.f32 %v1094, %v1095
        %v1097 = vrot.slane %v1090, 4
        %v1098 = vadd.f32 %v1090, %v1097
        %v1099 = vrot.slane %v1098, 2
        %v1100 = vadd.f32 %v1098, %v1099
        %v1101 = vrot.slane %v1100, 1
        %v1102 = vadd.f32 %v1100, %v1101
        %v1103 = vadd.f32 %v1096, %v1102
        %1104 = vadd.xlane.f32.xlu0 %v1103
        %v1105 = vpop.xlane.xlu0 %1104
        %v1106 = vmul.f32 %v1105, 10.0
        %v1107 = vadd.f32 %v1058, %v1106
        %v1108 = vmul.f32 %v1107, 0.98333335
        %v1109 = vsel %vm1085, 0.0, %v1083
        %v1110 = vsel %vm1086, 0.0, %v1084
        %v1111 = vmax.f32 %v1109, 0.0
        %v1112 = vmax.f32 %v1110, 0.0
        %v1113 = vpack.c.bf16 %v1090, %v1089
        %s1114 = scalar_lea.vmem %s295, 120 [#allocation9]
        %1115 = vst [vmem:[%s1114] sm:$0xff] %v1113
        %1116 = vst [vmem:[#allocation10] sm:$0xff] %v1111
        %1117 = vst [vmem:[#allocation10 + $0x8] sm:$0xff] %v1112
        %vm1118 = vcmask 0
        %1119 = vst.msk [vmem:[#allocation12] sm:$0x1] %vm1118, %v1108
        %s1120 = sand.u32 %s125, 1
        %s1121 = scalar_lea.sflag [#allocation5], %s1120
        %s1122 = sand.u32 %s125, 1
        %s1123 = smul.addr %s1122, 128
        %s1124 = scalar_lea.vmem [#allocation9], %s1123
        // Predicated region
        $region53: #{tpu_custom_call.1} parent=35 // pred_check
          %p1125 = pneg %p135
        $region54: #{tpu_custom_call.1} parent=35 // pred_check_branch
          %1127 = sbr.rel (%p1125) target = $region56
        $region55: #{tpu_custom_call.1} parent=35 // pred_region
          %s1128 = smul.u32 16, %s28
          %1130 = vsyncadd %s1121, 0
          %s1131 = smul.addr %s1128, 2
          %s1132 = smul.addr %s1131, 4
          %s1133 = scalar_lea.hbm %s4, %s1132
          %s1134 = sshll.u32 %s1124, 4
          %s1135 = int_to_ptr.vmem [resolvable:$true] %s1134
          %s1136 = sshll.u32 %s1133, 4
          %s1137 = int_to_ptr.hbm [resolvable:$true] %s1136
          %1142 = dma.vmem_to_hbm [thread:$0]  %s1135, 2048, %s1137, %s1121, 128, 128, 8
        $region56: #{tpu_custom_call.1} parent=35 // pred_fallthru
          _
        // Predicated region
        $region57: #{tpu_custom_call.1} parent=35 // pred_check
          %p1143 = pneg %p156
        $region58: #{tpu_custom_call.1} parent=35 // pred_check_branch
          %1145 = sbr.rel (%p1143) target = $region60
        $region59: #{tpu_custom_call.1} parent=35 // pred_region
          %1147 = vsyncadd [#allocation11], 0
          %s1149 = sshll.u32 [#allocation10], 4
          %s1150 = int_to_ptr.vmem [resolvable:$true] %s1149
          %s1151 = sshll.u32 %s5, 4
          %s1152 = int_to_ptr.hbm [resolvable:$true] %s1151
          %1154 = dma.vmem_to_hbm [thread:$0]  %s1150, 256, %s1152, [#allocation11]
        $region60: #{tpu_custom_call.1} parent=35 // pred_fallthru
          _
        // Predicated region
        $region61: #{tpu_custom_call.1} parent=35 // pred_check
          %p1155 = pneg %p177
        $region62: #{tpu_custom_call.1} parent=35 // pred_check_branch
          %1157 = sbr.rel (%p1155) target = $region64
        $region63: #{tpu_custom_call.1} parent=35 // pred_region
          %1159 = vsyncadd [#allocation11], 0
          %s1161 = sshll.u32 [#allocation12], 4
          %s1162 = int_to_ptr.vmem [resolvable:$true] %s1161
          %s1163 = sshll.u32 %s6, 4
          %s1164 = int_to_ptr.hbm [resolvable:$true] %s1163
          %1166 = dma.vmem_to_hbm [thread:$0]  %s1162, 16, %s1164, [#allocation11]
        $region64: #{tpu_custom_call.1} parent=35 // pred_fallthru
          _
        // Predicated region
        $region65: #{tpu_custom_call.1} parent=35 // pred_check
          %p1167 = pneg %p156
        $region66: #{tpu_custom_call.1} parent=35 // pred_check_branch
          %1169 = sbr.rel (%p1167) target = $region68
        $region67: #{tpu_custom_call.1} parent=35 // pred_region
          %1171 = dma.done [#allocation11], 256
        $region68: #{tpu_custom_call.1} parent=35 // pred_fallthru
          _
        // Predicated region
        $region69: #{tpu_custom_call.1} parent=35 // pred_check
          %p1172 = pneg %p177
        $region70: #{tpu_custom_call.1} parent=35 // pred_check_branch
          %1174 = sbr.rel (%p1172) target = $region72
        $region71: #{tpu_custom_call.1} parent=35 // pred_region
          %1176 = dma.done [#allocation11], 16
        $region72: #{tpu_custom_call.1} parent=35 // pred_fallthru
          _
      $region36: #{tpu_custom_call.1} parent=5 // pred_fallthru
        _
      %p1177 = scmp.le.s32.totalorder 2, %s23
      // Predicated region
      $region73: #{tpu_custom_call.1} parent=5 // pred_check
        %p1178 = pneg %p1177
      $region74: #{tpu_custom_call.1} parent=5 // pred_check_branch
        %1180 = sbr.rel (%p1178) target = $region76
      $region75: #{tpu_custom_call.1} parent=5 // pred_region
        %s1181 = ssub.s32 %s23, 2
        // Predicated region
        $region77: #{tpu_custom_call.1} parent=75 // pred_check
          %p1182 = pneg %p141
        $region78: #{tpu_custom_call.1} parent=75 // pred_check_branch
          %1184 = sbr.rel (%p1182) target = $region80
        $region79: #{tpu_custom_call.1} parent=75 // pred_region
          %s1185 = sand.u32 %s126, 1
          %s1186 = scalar_lea.sflag [#allocation5], %s1185
          %s1187 = sand.u32 %s126, 1
          %s1188 = smul.addr %s1187, 128
          %s1189 = scalar_lea.vmem [#allocation9], %s1188
          %1191 = dma.done %s1186, 2048
        $region80: #{tpu_custom_call.1} parent=75 // pred_fallthru
          _
      $region76: #{tpu_custom_call.1} parent=5 // pred_fallthru
        _
    $region6: #{tpu_custom_call.1} parent=1 // loop_footer
      %s27 = sadd.s32 1, %s23
    $region7: #{tpu_custom_call.1} parent=1 // loop_footer_branch
      %22 = sbr.rel target = $region3
    $region8: #{tpu_custom_call.1} parent=1 // loop_exit
      _
    %1192 = vsyncpa [#allocation4], 1
    %s1193 = scalar_lea.sflag [#allocation4], 1
    %1194 = vsyncpa %s1193, 1
    %1195 = vsyncpa [#allocation7], 1
    %1196 = vsyncpa [#allocation5], 1
    %s1197 = scalar_lea.sflag [#allocation5], 1
    %1198 = vsyncpa %s1197, 1
    %1199 = vsyncpa [#allocation11], 1

</llo_original>
